<compile_context>
chip_gen: v6e
topology: v6e:2x2x1
jax: 0.10.0
libtpu: 0.0.40
codegen_flags: <defaults>
</compile_context>

<pallas_src>
import functools

import jax
import jax.numpy as jnp
from jax.experimental import pallas as pl
from jax.experimental.pallas import tpu as pltpu


# ------------------------------ Pallas kernel ------------------------------

def _layernorm(x, g, b, eps=1e-5):
    mu = jnp.mean(x, axis=-1, keepdims=True)
    var = jnp.mean((x - mu) ** 2, axis=-1, keepdims=True)
    return (x - mu) * jax.lax.rsqrt(var + eps) * g + b


def _layer_kernel(src_ref, mem_ref, bias_ref, wqkv_ref, bqkv_ref, wo_ref,
                  w1_ref, w2_ref, vd_ref, vf_ref, o_ref, *, nhead, scale):
    """One full encoder layer for a tile of Bt batch elements (all heads)."""
    Bt, Ls, D = src_ref.shape
    Lm = mem_ref.shape[1]
    Lk = Lm + Ls
    hd = D // nhead
    N = Bt * Ls
    bf = jnp.bfloat16

    x = src_ref[...]                                           # (Bt, Ls, D) f32
    x_flat = x.reshape(N, D)
    kx = jnp.concatenate([mem_ref[...], x], axis=1)            # (Bt, Lk, D) f32
    x_b = x_flat.astype(bf)                                    # (N, D)
    kx_b = kx.reshape(Bt * Lk, D).astype(bf)                   # (Bt*Lk, D)

    # Per-head attention; weights are pre-split per head (leading index only,
    # no lane slicing of activations). Output projection is folded into the
    # head loop so the accumulated result is already lane-dense (N, D).
    attn = jnp.zeros((N, D), jnp.float32)
    for h in range(nhead):
        q_h = (jnp.dot(x_b, wqkv_ref[h], preferred_element_type=jnp.float32)
               + bqkv_ref[h]).astype(bf).reshape(Bt, Ls, hd)
        k_h = (jnp.dot(kx_b, wqkv_ref[nhead + h],
                       preferred_element_type=jnp.float32)
               + bqkv_ref[nhead + h]).astype(bf).reshape(Bt, Lk, hd)
        v_h = (jnp.dot(kx_b, wqkv_ref[2 * nhead + h],
                       preferred_element_type=jnp.float32)
               + bqkv_ref[2 * nhead + h]).astype(bf).reshape(Bt, Lk, hd)

        # Scores batched over the Bt axis; head-dim contraction on the lane axis.
        s = jnp.einsum("bqd,bkd->bqk", q_h, k_h,
                       preferred_element_type=jnp.float32) * scale   # (Bt, Ls, Lk)
        s = s + bias_ref[h].astype(jnp.float32)        # edge bias + padding mask
        m = jnp.max(s, axis=-1, keepdims=True)
        p = jnp.exp(s - m)
        p = p * pl.reciprocal(jnp.sum(p, axis=-1, keepdims=True), approx=True)
        ctx = jnp.einsum("bqk,bkd->bqd", p.astype(bf), v_h,
                         preferred_element_type=jnp.float32)          # (Bt, Ls, hd)
        attn = attn + jnp.dot(ctx.reshape(N, hd).astype(bf), wo_ref[h],
                              preferred_element_type=jnp.float32)     # (N, D)

    # Output-projection bias + residual + LN1.
    x1 = _layernorm(x_flat + attn + vd_ref[0:1, :], vd_ref[1:2, :], vd_ref[2:3, :])

    # FFN + residual + LN2.
    hmid = jnp.maximum(
        jnp.dot(x1.astype(bf), w1_ref[...], preferred_element_type=jnp.float32)
        + vf_ref[...], 0.0)
    y = (jnp.dot(hmid.astype(bf), w2_ref[...], preferred_element_type=jnp.float32)
         + vd_ref[3:4, :])
    o_ref[...] = _layernorm(x1 + y, vd_ref[4:5, :], vd_ref[5:6, :]).reshape(Bt, Ls, D)


# ------------------------------ Pallas wrapper ------------------------------

def _pick_block_batch(B, cap=8):
    """Largest batch tile dividing B that keeps the grid length >= 2 (so the
    'parallel' grid axis can still shard across TensorCores on v7x)."""
    best = 1
    for bt in range(1, min(B, cap) + 1):
        if B % bt == 0 and B // bt >= 2:
            best = bt
    return best


def _vmem_limit_bytes(Bt, Ls, Lm, Lk, D, F, H):
    hd = D // H
    weights = (3 * H * D * hd + H * hd * D + D * F + F * D) * 2       # bf16, 1-buffered
    weights += (3 * H * hd + 6 * D + F) * 4                           # f32 vectors
    stream = 2 * Bt * (Ls * D + Lm * D + Ls * D) * 4                  # src/mem in + out (2-buf)
    stream += 2 * H * Bt * Ls * Lk * 2                                # bf16 bias (2-buf)
    live = Bt * ((Ls + 2 * Lk) * D + 3 * (Ls + 2 * Lk) * hd
                 + 3 * Ls * Lk + Ls * F + 4 * Ls * D) * 4             # in-kernel temporaries
    est = weights + stream + live
    return int(min(64 << 20, max(32 << 20, 2 * est)))


def layer_pallas(src_b, mem_b, bias, p, nhead):
    """One fused encoder layer.
    src_b: (B, Ls, D) f32; mem_b: (B, Lm, D) f32;
    bias:  (H, B, Ls, Lk) bf16 additive score bias (edge labels + padding)."""
    B, Ls, D = src_b.shape
    Lm = mem_b.shape[1]
    Lk = Lm + Ls
    H = nhead
    F = p["w1"].shape[1]
    hd = D // H
    scale = 1.0 / (hd ** 0.5)
    Bt = _pick_block_batch(B)

    def const_spec(shp):
        # Constant-index blocks: fetch once, single-buffered (halves VMEM).
        return pl.BlockSpec(shp, lambda b, _n=len(shp): (0,) * _n,
                            pipeline_mode=pl.Buffered(1))

    return pl.pallas_call(
        functools.partial(_layer_kernel, nhead=H, scale=scale),
        out_shape=jax.ShapeDtypeStruct((B, Ls, D), jnp.float32),
        grid=(B // Bt,),
        in_specs=[
            pl.BlockSpec((Bt, Ls, D), lambda b: (b, 0, 0)),            # src
            pl.BlockSpec((Bt, Lm, D), lambda b: (b, 0, 0)),            # memory
            pl.BlockSpec((H, Bt, Ls, Lk), lambda b: (0, b, 0, 0)),     # score bias (bf16)
            const_spec((3 * H, D, hd)),                                # Wq/Wk/Wv per head
            const_spec((3 * H, 1, hd)),                                # bq/bk/bv per head
            const_spec((H, hd, D)),                                    # Wo per head
            const_spec((D, F)),                                        # W1
            const_spec((F, D)),                                        # W2
            const_spec((6, D)),                                        # bo,g1,be1,b2,g2,be2
            const_spec((1, F)),                                        # b1
        ],
        out_specs=pl.BlockSpec((Bt, Ls, D), lambda b: (b, 0, 0)),
        compiler_params=pltpu.CompilerParams(
            dimension_semantics=("parallel",),
            vmem_limit_bytes=_vmem_limit_bytes(Bt, Ls, Lm, Lk, D, F, H)),
    )(src_b, mem_b, bias, p["wqkv"], p["bqkv"], p["wo"], p["w1"], p["w2"],
      p["vecd"], p["vecf"])


# ------------------------- module-level forward (glue) -------------------------

def _build_masks(mem_edge_mask, mem_pad_mask, src_edge_mask, src_pad_mask):
    B, Ls, Lm, mnl = mem_edge_mask.shape
    snl = src_edge_mask.shape[-1]
    ext_mem = jnp.concatenate(
        [mem_edge_mask, jnp.zeros((B, Ls, Lm, snl), mem_edge_mask.dtype)], axis=-1)
    ext_src = jnp.concatenate(
        [jnp.zeros((B, Ls, Ls, mnl), src_edge_mask.dtype), src_edge_mask], axis=-1)
    edge_mask = jnp.concatenate([ext_mem, ext_src], axis=2)            # (B, Ls, Lk, nL)
    pad_mask = jnp.concatenate([mem_pad_mask, src_pad_mask], axis=-1)  # (B, Ls, Lk)
    return edge_mask, pad_mask


def encoder_forward(params_list, memory, mem_edge_mask, mem_pad_mask,
                    src, src_edge_mask, src_pad_mask, nhead):
    out = jnp.transpose(src, (1, 0, 2)).astype(jnp.float32)       # (B, Ls, D)
    mem_b = jnp.transpose(memory, (1, 0, 2)).astype(jnp.float32)  # (B, Lm, D)
    edge_mask, pad_mask = _build_masks(mem_edge_mask, mem_pad_mask,
                                       src_edge_mask, src_pad_mask)
    # Padding mask folded into an additive bias once (shared by all layers).
    pad_add = jnp.where(pad_mask > 0.5, jnp.float32(-1e30), jnp.float32(0.0))
    for p in params_list:
        # Per-layer edge-label bias precomputed with one XLA matmul; streamed
        # to the kernel as bf16 (head-major so the kernel only indexes a
        # leading dim).
        bias = (jnp.einsum("bqkl,hl->hbqk", edge_mask, p["lbl"])
                + pad_add[None]).astype(jnp.bfloat16)             # (H, B, Ls, Lk)
        out = layer_pallas(out, mem_b, bias, p, nhead)
    return jnp.transpose(out, (1, 0, 2))                          # (Ls, B, D)


# ------------------------------ pure-JAX reference ------------------------------

def _ref_encoder(params_list_raw, memory, mem_edge_mask, mem_pad_mask,
                 src, src_edge_mask, src_pad_mask, nhead):
    out = jnp.transpose(src, (1, 0, 2))
    mem_b = jnp.transpose(memory, (1, 0, 2))
    edge_mask, pad_mask = _build_masks(mem_edge_mask, mem_pad_mask,
                                       src_edge_mask, src_pad_mask)
    B, Ls, D = out.shape
    hd = D // nhead
    for p in params_list_raw:
        key = jnp.concatenate([mem_b, out], axis=1)
        Lk = key.shape[1]
        q = (out @ p["wq"] + p["bq"]).reshape(B, Ls, nhead, hd).transpose(0, 2, 1, 3)
        k = (key @ p["wk"] + p["bk"]).reshape(B, Lk, nhead, hd).transpose(0, 2, 1, 3)
        v = (key @ p["wv"] + p["bv"]).reshape(B, Lk, nhead, hd).transpose(0, 2, 1, 3)
        s = jnp.einsum("bhqd,bhkd->bhqk", q, k) / (hd ** 0.5)
        s = s + jnp.einsum("bqkl,hl->bhqk", edge_mask, p["lbl"])
        s = jnp.where(pad_mask[:, None] > 0.5, -1e30, s)
        a = jax.nn.softmax(s, axis=-1)
        ctx = jnp.einsum("bhqk,bhkd->bhqd", a, v).transpose(0, 2, 1, 3).reshape(B, Ls, D)
        x = _layernorm(out + ctx @ p["wo"] + p["bo"], p["g1"], p["be1"])
        y = jnp.maximum(x @ p["w1"] + p["b1"], 0.0) @ p["w2"] + p["b2"]
        out = _layernorm(x + y, p["g2"], p["be2"])
    return jnp.transpose(out, (1, 0, 2))


# ------------------------------ parameters ------------------------------

def init_layer_params(key, d_model, nhead, dff, nlabels):
    ks = jax.random.split(key, 13)
    s = 0.08
    n = lambda k, shp: (jax.random.normal(k, shp, jnp.float32) * s)
    return dict(
        wq=n(ks[0], (d_model, d_model)), bq=n(ks[1], (d_model,)),
        wk=n(ks[2], (d_model, d_model)), bk=n(ks[3], (d_model,)),
        wv=n(ks[4], (d_model, d_model)), bv=n(ks[5], (d_model,)),
        wo=n(ks[6], (d_model, d_model)), bo=n(ks[7], (d_model,)),
        lbl=n(ks[8], (nhead, nlabels)),
        w1=n(ks[9], (d_model, dff)), b1=n(ks[10], (dff,)),
        w2=n(ks[11], (dff, d_model)), b2=n(ks[12], (d_model,)),
        g1=jnp.ones((d_model,), jnp.float32), be1=jnp.zeros((d_model,), jnp.float32),
        g2=jnp.ones((d_model,), jnp.float32), be2=jnp.zeros((d_model,), jnp.float32),
    )


def prepare_layer_params(p, nhead):
    """Hoisted, one-time weight prep: bf16 MXU weights; Wq/Wk/Wv and their
    biases pre-split per head (leading head axis, no in-kernel lane slicing);
    the ten small vectors packed into (6, D) and (1, F) arrays."""
    D = p["wq"].shape[0]
    F = p["w1"].shape[1]
    hd = D // nhead
    bf = jnp.bfloat16

    def split_w(w):                       # (D, D) -> (H, D, hd)
        return w.reshape(D, nhead, hd).transpose(1, 0, 2)

    def split_b(b):                       # (D,) -> (H, 1, hd)
        return b.reshape(nhead, 1, hd)

    wqkv = jnp.concatenate([split_w(p["wq"]), split_w(p["wk"]), split_w(p["wv"])],
                           axis=0).astype(bf)                     # (3H, D, hd)
    bqkv = jnp.concatenate([split_b(p["bq"]), split_b(p["bk"]), split_b(p["bv"])],
                           axis=0).astype(jnp.float32)            # (3H, 1, hd)
    vecd = jnp.stack([p["bo"], p["g1"], p["be1"], p["b2"], p["g2"], p["be2"]],
                     axis=0).astype(jnp.float32)                  # (6, D)
    return dict(
        wqkv=wqkv, bqkv=bqkv,
        wo=p["wo"].reshape(nhead, hd, D).astype(bf),
        w1=p["w1"].astype(bf), w2=p["w2"].astype(bf),
        vecd=vecd, vecf=p["b1"].reshape(1, F).astype(jnp.float32),
        lbl=p["lbl"].astype(jnp.float32),
    )


# ---------------------------------- main ----------------------------------

if __name__ == "__main__":
    B, Ls, Lm = 2, 8, 16
    d_model, nhead, dff = 32, 4, 64
    memory_nlabels, self_nlabels = 3, 5
    num_layers = 2
    nlabels = memory_nlabels + self_nlabels

    root = jax.random.PRNGKey(0)
    k_mem, k_src, k_mem_em, k_src_em, k_mem_pad, k_src_pad, k_par = \
        jax.random.split(root, 7)

    memory = jax.random.normal(k_mem, (Lm, B, d_model), jnp.float32)
    src = jax.random.normal(k_src, (Ls, B, d_model), jnp.float32)
    mem_edge_mask = jax.random.bernoulli(
        k_mem_em, 0.3, (B, Ls, Lm, memory_nlabels)).astype(jnp.float32)
    src_edge_mask = jax.random.bernoulli(
        k_src_em, 0.3, (B, Ls, Ls, self_nlabels)).astype(jnp.float32)
    mem_pad_mask = jax.random.bernoulli(k_mem_pad, 0.15, (B, Ls, Lm)).astype(jnp.float32)
    src_pad_mask = jax.random.bernoulli(k_src_pad, 0.15, (B, Ls, Ls)).astype(jnp.float32)
    # make sure no query row is fully masked
    mem_pad_mask = mem_pad_mask.at[..., 0].set(0.0)
    src_pad_mask = src_pad_mask.at[..., 0].set(0.0)

    layer_keys = jax.random.split(k_par, num_layers)
    raw_params = [init_layer_params(k, d_model, nhead, dff, nlabels)
                  for k in layer_keys]
    prep_params = [prepare_layer_params(p, nhead) for p in raw_params]

    fwd = jax.jit(functools.partial(encoder_forward, nhead=nhead))
    out = fwd(prep_params, memory, mem_edge_mask, mem_pad_mask,
              src, src_edge_mask, src_pad_mask)
    out = jax.block_until_ready(out)
    assert out.shape == (Ls, B, d_model)
    assert bool(jnp.all(jnp.isfinite(out)))

    ref = _ref_encoder(raw_params, memory, mem_edge_mask, mem_pad_mask,
                       src, src_edge_mask, src_pad_mask, nhead)
    assert bool(jnp.allclose(out, ref, rtol=5e-2, atol=5e-2)), \
        float(jnp.max(jnp.abs(out - ref)))

    print("KERNEL_OK")
</pallas_src>

<mosaic_0001>
module attributes {stable_mosaic.version = 11 : i64} {
  func.func @_layer_kernel(%arg0: i32, %arg1: memref<1x8x32xf32, #tpu.memory_space<vmem>>, %arg2: memref<1x16x32xf32, #tpu.memory_space<vmem>>, %arg3: memref<4x1x8x24xbf16, #tpu.memory_space<vmem>>, %arg4: memref<12x32x8xbf16, #tpu.memory_space<vmem>>, %arg5: memref<12x1x8xf32, #tpu.memory_space<vmem>>, %arg6: memref<4x8x32xbf16, #tpu.memory_space<vmem>>, %arg7: memref<32x64xbf16, #tpu.memory_space<vmem>>, %arg8: memref<64x32xbf16, #tpu.memory_space<vmem>>, %arg9: memref<6x32xf32, #tpu.memory_space<vmem>>, %arg10: memref<1x64xf32, #tpu.memory_space<vmem>>, %arg11: memref<1x8x32xf32, #tpu.memory_space<vmem>>) attributes {dimension_semantics = [#tpu.dimension_semantics<parallel>], iteration_bounds = array<i64: 2>, scalar_prefetch = 0 : i64, scratch_operands = 0 : i64, tpu.core_type = #tpu.core_type<tc>, window_params = [{transform_indices = @transform_0, window_bounds = array<i64: 1, 8, 32>}, {transform_indices = @transform_1, window_bounds = array<i64: 1, 16, 32>}, {transform_indices = @transform_2, window_bounds = array<i64: 4, 1, 8, 24>}, {pipeline_mode = #tpu.pipeline_mode<synchronous>, transform_indices = @transform_3, window_bounds = array<i64: 12, 32, 8>}, {pipeline_mode = #tpu.pipeline_mode<synchronous>, transform_indices = @transform_4, window_bounds = array<i64: 12, 1, 8>}, {pipeline_mode = #tpu.pipeline_mode<synchronous>, transform_indices = @transform_5, window_bounds = array<i64: 4, 8, 32>}, {pipeline_mode = #tpu.pipeline_mode<synchronous>, transform_indices = @transform_6, window_bounds = array<i64: 32, 64>}, {pipeline_mode = #tpu.pipeline_mode<synchronous>, transform_indices = @transform_7, window_bounds = array<i64: 64, 32>}, {pipeline_mode = #tpu.pipeline_mode<synchronous>, transform_indices = @transform_8, window_bounds = array<i64: 6, 32>}, {pipeline_mode = #tpu.pipeline_mode<synchronous>, transform_indices = @transform_9, window_bounds = array<i64: 1, 64>}, {transform_indices = @transform_10, window_bounds = array<i64: 1, 8, 32>}]} {
    %c0 = arith.constant 0 : index
    %c0_0 = arith.constant 0 : index
    %c0_1 = arith.constant 0 : index
    %0 = vector.load %arg1[%c0, %c0_0, %c0_1] : memref<1x8x32xf32, #tpu.memory_space<vmem>>, vector<1x8x32xf32>
    %1 = vector.shape_cast %0 : vector<1x8x32xf32> to vector<8x32xf32>
    %c0_2 = arith.constant 0 : index
    %c0_3 = arith.constant 0 : index
    %c0_4 = arith.constant 0 : index
    %2 = vector.load %arg2[%c0_2, %c0_3, %c0_4] : memref<1x16x32xf32, #tpu.memory_space<vmem>>, vector<1x16x32xf32>
    %3 = tpu.concatenate %2, %0 in 1 : vector<1x16x32xf32>, vector<1x8x32xf32> -> vector<1x24x32xf32>
    %4 = arith.truncf %1 : vector<8x32xf32> to vector<8x32xbf16>
    %5 = vector.shape_cast %3 : vector<1x24x32xf32> to vector<24x32xf32>
    %6 = arith.truncf %5 : vector<24x32xf32> to vector<24x32xbf16>
    %cst = arith.constant 0.000000e+00 : f32
    %7 = vector.broadcast %cst : f32 to vector<8x32xf32>
    %c0_5 = arith.constant 0 : index
    %c0_6 = arith.constant 0 : index
    %c0_7 = arith.constant 0 : index
    %8 = vector.load %arg4[%c0_5, %c0_6, %c0_7] : memref<12x32x8xbf16, #tpu.memory_space<vmem>>, vector<1x32x8xbf16>
    %9 = vector.shape_cast %8 : vector<1x32x8xbf16> to vector<32x8xbf16>
    %cst_8 = arith.constant dense<0.000000e+00> : vector<8x8xf32>
    %10 = tpu.matmul %4, %9, %cst_8 {dimension_numbers = #tpu.dot_dimension_numbers<[1], [0], [0], [1], [0, 0, 1, 1], [], []>} : vector<8x32xbf16>, vector<32x8xbf16>, vector<8x8xf32> -> vector<8x8xf32>
    %c0_9 = arith.constant 0 : index
    %c0_10 = arith.constant 0 : index
    %c0_11 = arith.constant 0 : index
    %11 = vector.load %arg5[%c0_9, %c0_10, %c0_11] : memref<12x1x8xf32, #tpu.memory_space<vmem>>, vector<1x1x8xf32>
    %12 = vector.shape_cast %11 : vector<1x1x8xf32> to vector<1x8xf32>
    %13 = vector.broadcast %12 : vector<1x8xf32> to vector<8x8xf32>
    %14 = arith.addf %10, %13 : vector<8x8xf32>
    %15 = arith.truncf %14 : vector<8x8xf32> to vector<8x8xbf16>
    %16 = vector.shape_cast %15 : vector<8x8xbf16> to vector<1x8x8xbf16>
    %c4 = arith.constant 4 : index
    %c0_12 = arith.constant 0 : index
    %c0_13 = arith.constant 0 : index
    %17 = vector.load %arg4[%c4, %c0_12, %c0_13] : memref<12x32x8xbf16, #tpu.memory_space<vmem>>, vector<1x32x8xbf16>
    %18 = vector.shape_cast %17 : vector<1x32x8xbf16> to vector<32x8xbf16>
    %cst_14 = arith.constant dense<0.000000e+00> : vector<24x8xf32>
    %19 = tpu.matmul %6, %18, %cst_14 {dimension_numbers = #tpu.dot_dimension_numbers<[1], [0], [0], [1], [0, 0, 1, 1], [], []>} : vector<24x32xbf16>, vector<32x8xbf16>, vector<24x8xf32> -> vector<24x8xf32>
    %c4_15 = arith.constant 4 : index
    %c0_16 = arith.constant 0 : index
    %c0_17 = arith.constant 0 : index
    %20 = vector.load %arg5[%c4_15, %c0_16, %c0_17] : memref<12x1x8xf32, #tpu.memory_space<vmem>>, vector<1x1x8xf32>
    %21 = vector.shape_cast %20 : vector<1x1x8xf32> to vector<1x8xf32>
    %22 = vector.broadcast %21 : vector<1x8xf32> to vector<24x8xf32>
    %23 = arith.addf %19, %22 : vector<24x8xf32>
    %24 = arith.truncf %23 : vector<24x8xf32> to vector<24x8xbf16>
    %25 = vector.shape_cast %24 : vector<24x8xbf16> to vector<1x24x8xbf16>
    %c8 = arith.constant 8 : index
    %c0_18 = arith.constant 0 : index
    %c0_19 = arith.constant 0 : index
    %26 = vector.load %arg4[%c8, %c0_18, %c0_19] : memref<12x32x8xbf16, #tpu.memory_space<vmem>>, vector<1x32x8xbf16>
    %27 = vector.shape_cast %26 : vector<1x32x8xbf16> to vector<32x8xbf16>
    %cst_20 = arith.constant dense<0.000000e+00> : vector<24x8xf32>
    %28 = tpu.matmul %6, %27, %cst_20 {dimension_numbers = #tpu.dot_dimension_numbers<[1], [0], [0], [1], [0, 0, 1, 1], [], []>} : vector<24x32xbf16>, vector<32x8xbf16>, vector<24x8xf32> -> vector<24x8xf32>
    %c8_21 = arith.constant 8 : index
    %c0_22 = arith.constant 0 : index
    %c0_23 = arith.constant 0 : index
    %29 = vector.load %arg5[%c8_21, %c0_22, %c0_23] : memref<12x1x8xf32, #tpu.memory_space<vmem>>, vector<1x1x8xf32>
    %30 = vector.shape_cast %29 : vector<1x1x8xf32> to vector<1x8xf32>
    %31 = vector.broadcast %30 : vector<1x8xf32> to vector<24x8xf32>
    %32 = arith.addf %28, %31 : vector<24x8xf32>
    %33 = arith.truncf %32 : vector<24x8xf32> to vector<24x8xbf16>
    %34 = vector.shape_cast %33 : vector<24x8xbf16> to vector<1x24x8xbf16>
    "tpu.trace_start"() <{level = 10 : i32, message = "bqd,bkd->bqk"}> : () -> ()
    %cst_24 = arith.constant dense<0.000000e+00> : vector<1x8x24xf32>
    %35 = tpu.matmul %16, %25, %cst_24 {dimension_numbers = #tpu.dot_dimension_numbers<[2], [2], [1], [1], [0, 0, 0, 1, 1, 1], [0], [0]>} : vector<1x8x8xbf16>, vector<1x24x8xbf16>, vector<1x8x24xf32> -> vector<1x8x24xf32>
    "tpu.trace_stop"() : () -> ()
    %cst_25 = arith.constant 0.353553385 : f32
    %36 = vector.broadcast %cst_25 : f32 to vector<1x8x24xf32>
    %37 = arith.mulf %35, %36 : vector<1x8x24xf32>
    %c0_26 = arith.constant 0 : index
    %c0_27 = arith.constant 0 : index
    %c0_28 = arith.constant 0 : index
    %c0_29 = arith.constant 0 : index
    %38 = vector.load %arg3[%c0_26, %c0_27, %c0_28, %c0_29] : memref<4x1x8x24xbf16, #tpu.memory_space<vmem>>, vector<1x1x8x24xbf16>
    %39 = vector.shape_cast %38 : vector<1x1x8x24xbf16> to vector<1x8x24xbf16>
    %40 = arith.extf %39 : vector<1x8x24xbf16> to vector<1x8x24xf32>
    %41 = arith.addf %37, %40 : vector<1x8x24xf32>
    %cst_30 = arith.constant dense<0xFF800000> : vector<1x8xf32>
    %42 = vector.multi_reduction <maximumf>, %41, %cst_30 [2] : vector<1x8x24xf32> to vector<1x8xf32>
    %43 = vector.shape_cast %42 : vector<1x8xf32> to vector<1x8x1xf32>
    %44 = vector.broadcast %43 : vector<1x8x1xf32> to vector<1x8x24xf32>
    %45 = arith.subf %41, %44 : vector<1x8x24xf32>
    %46 = math.exp %45 : vector<1x8x24xf32>
    %cst_31 = arith.constant dense<0.000000e+00> : vector<1x8xf32>
    %47 = vector.multi_reduction <add>, %46, %cst_31 [2] : vector<1x8x24xf32> to vector<1x8xf32>
    %48 = vector.shape_cast %47 : vector<1x8xf32> to vector<1x8x1xf32>
    %49 = tpu.reciprocal %48 {approx = true} : vector<1x8x1xf32> -> vector<1x8x1xf32>
    %50 = vector.broadcast %49 : vector<1x8x1xf32> to vector<1x8x24xf32>
    %51 = arith.mulf %46, %50 : vector<1x8x24xf32>
    %52 = arith.truncf %51 : vector<1x8x24xf32> to vector<1x8x24xbf16>
    "tpu.trace_start"() <{level = 10 : i32, message = "bqk,bkd->bqd"}> : () -> ()
    %cst_32 = arith.constant dense<0.000000e+00> : vector<1x8x8xf32>
    %53 = tpu.matmul %52, %34, %cst_32 {dimension_numbers = #tpu.dot_dimension_numbers<[2], [1], [1], [2], [0, 0, 0, 1, 1, 2], [0], [0]>} : vector<1x8x24xbf16>, vector<1x24x8xbf16>, vector<1x8x8xf32> -> vector<1x8x8xf32>
    "tpu.trace_stop"() : () -> ()
    %54 = vector.shape_cast %53 : vector<1x8x8xf32> to vector<8x8xf32>
    %55 = arith.truncf %54 : vector<8x8xf32> to vector<8x8xbf16>
    %c0_33 = arith.constant 0 : index
    %c0_34 = arith.constant 0 : index
    %c0_35 = arith.constant 0 : index
    %56 = vector.load %arg6[%c0_33, %c0_34, %c0_35] : memref<4x8x32xbf16, #tpu.memory_space<vmem>>, vector<1x8x32xbf16>
    %57 = vector.shape_cast %56 : vector<1x8x32xbf16> to vector<8x32xbf16>
    %cst_36 = arith.constant dense<0.000000e+00> : vector<8x32xf32>
    %58 = tpu.matmul %55, %57, %cst_36 {dimension_numbers = #tpu.dot_dimension_numbers<[1], [0], [0], [1], [0, 0, 1, 1], [], []>} : vector<8x8xbf16>, vector<8x32xbf16>, vector<8x32xf32> -> vector<8x32xf32>
    %59 = arith.addf %7, %58 : vector<8x32xf32>
    %c1 = arith.constant 1 : index
    %c0_37 = arith.constant 0 : index
    %c0_38 = arith.constant 0 : index
    %60 = vector.load %arg4[%c1, %c0_37, %c0_38] : memref<12x32x8xbf16, #tpu.memory_space<vmem>>, vector<1x32x8xbf16>
    %61 = vector.shape_cast %60 : vector<1x32x8xbf16> to vector<32x8xbf16>
    %cst_39 = arith.constant dense<0.000000e+00> : vector<8x8xf32>
    %62 = tpu.matmul %4, %61, %cst_39 {dimension_numbers = #tpu.dot_dimension_numbers<[1], [0], [0], [1], [0, 0, 1, 1], [], []>} : vector<8x32xbf16>, vector<32x8xbf16>, vector<8x8xf32> -> vector<8x8xf32>
    %c1_40 = arith.constant 1 : index
    %c0_41 = arith.constant 0 : index
    %c0_42 = arith.constant 0 : index
    %63 = vector.load %arg5[%c1_40, %c0_41, %c0_42] : memref<12x1x8xf32, #tpu.memory_space<vmem>>, vector<1x1x8xf32>
    %64 = vector.shape_cast %63 : vector<1x1x8xf32> to vector<1x8xf32>
    %65 = vector.broadcast %64 : vector<1x8xf32> to vector<8x8xf32>
    %66 = arith.addf %62, %65 : vector<8x8xf32>
    %67 = arith.truncf %66 : vector<8x8xf32> to vector<8x8xbf16>
    %68 = vector.shape_cast %67 : vector<8x8xbf16> to vector<1x8x8xbf16>
    %c5 = arith.constant 5 : index
    %c0_43 = arith.constant 0 : index
    %c0_44 = arith.constant 0 : index
    %69 = vector.load %arg4[%c5, %c0_43, %c0_44] : memref<12x32x8xbf16, #tpu.memory_space<vmem>>, vector<1x32x8xbf16>
    %70 = vector.shape_cast %69 : vector<1x32x8xbf16> to vector<32x8xbf16>
    %cst_45 = arith.constant dense<0.000000e+00> : vector<24x8xf32>
    %71 = tpu.matmul %6, %70, %cst_45 {dimension_numbers = #tpu.dot_dimension_numbers<[1], [0], [0], [1], [0, 0, 1, 1], [], []>} : vector<24x32xbf16>, vector<32x8xbf16>, vector<24x8xf32> -> vector<24x8xf32>
    %c5_46 = arith.constant 5 : index
    %c0_47 = arith.constant 0 : index
    %c0_48 = arith.constant 0 : index
    %72 = vector.load %arg5[%c5_46, %c0_47, %c0_48] : memref<12x1x8xf32, #tpu.memory_space<vmem>>, vector<1x1x8xf32>
    %73 = vector.shape_cast %72 : vector<1x1x8xf32> to vector<1x8xf32>
    %74 = vector.broadcast %73 : vector<1x8xf32> to vector<24x8xf32>
    %75 = arith.addf %71, %74 : vector<24x8xf32>
    %76 = arith.truncf %75 : vector<24x8xf32> to vector<24x8xbf16>
    %77 = vector.shape_cast %76 : vector<24x8xbf16> to vector<1x24x8xbf16>
    %c9 = arith.constant 9 : index
    %c0_49 = arith.constant 0 : index
    %c0_50 = arith.constant 0 : index
    %78 = vector.load %arg4[%c9, %c0_49, %c0_50] : memref<12x32x8xbf16, #tpu.memory_space<vmem>>, vector<1x32x8xbf16>
    %79 = vector.shape_cast %78 : vector<1x32x8xbf16> to vector<32x8xbf16>
    %cst_51 = arith.constant dense<0.000000e+00> : vector<24x8xf32>
    %80 = tpu.matmul %6, %79, %cst_51 {dimension_numbers = #tpu.dot_dimension_numbers<[1], [0], [0], [1], [0, 0, 1, 1], [], []>} : vector<24x32xbf16>, vector<32x8xbf16>, vector<24x8xf32> -> vector<24x8xf32>
    %c9_52 = arith.constant 9 : index
    %c0_53 = arith.constant 0 : index
    %c0_54 = arith.constant 0 : index
    %81 = vector.load %arg5[%c9_52, %c0_53, %c0_54] : memref<12x1x8xf32, #tpu.memory_space<vmem>>, vector<1x1x8xf32>
    %82 = vector.shape_cast %81 : vector<1x1x8xf32> to vector<1x8xf32>
    %83 = vector.broadcast %82 : vector<1x8xf32> to vector<24x8xf32>
    %84 = arith.addf %80, %83 : vector<24x8xf32>
    %85 = arith.truncf %84 : vector<24x8xf32> to vector<24x8xbf16>
    %86 = vector.shape_cast %85 : vector<24x8xbf16> to vector<1x24x8xbf16>
    "tpu.trace_start"() <{level = 10 : i32, message = "bqd,bkd->bqk"}> : () -> ()
    %cst_55 = arith.constant dense<0.000000e+00> : vector<1x8x24xf32>
    %87 = tpu.matmul %68, %77, %cst_55 {dimension_numbers = #tpu.dot_dimension_numbers<[2], [2], [1], [1], [0, 0, 0, 1, 1, 1], [0], [0]>} : vector<1x8x8xbf16>, vector<1x24x8xbf16>, vector<1x8x24xf32> -> vector<1x8x24xf32>
    "tpu.trace_stop"() : () -> ()
    %cst_56 = arith.constant 0.353553385 : f32
    %88 = vector.broadcast %cst_56 : f32 to vector<1x8x24xf32>
    %89 = arith.mulf %87, %88 : vector<1x8x24xf32>
    %c1_57 = arith.constant 1 : index
    %c0_58 = arith.constant 0 : index
    %c0_59 = arith.constant 0 : index
    %c0_60 = arith.constant 0 : index
    %90 = vector.load %arg3[%c1_57, %c0_58, %c0_59, %c0_60] : memref<4x1x8x24xbf16, #tpu.memory_space<vmem>>, vector<1x1x8x24xbf16>
    %91 = vector.shape_cast %90 : vector<1x1x8x24xbf16> to vector<1x8x24xbf16>
    %92 = arith.extf %91 : vector<1x8x24xbf16> to vector<1x8x24xf32>
    %93 = arith.addf %89, %92 : vector<1x8x24xf32>
    %cst_61 = arith.constant dense<0xFF800000> : vector<1x8xf32>
    %94 = vector.multi_reduction <maximumf>, %93, %cst_61 [2] : vector<1x8x24xf32> to vector<1x8xf32>
    %95 = vector.shape_cast %94 : vector<1x8xf32> to vector<1x8x1xf32>
    %96 = vector.broadcast %95 : vector<1x8x1xf32> to vector<1x8x24xf32>
    %97 = arith.subf %93, %96 : vector<1x8x24xf32>
    %98 = math.exp %97 : vector<1x8x24xf32>
    %cst_62 = arith.constant dense<0.000000e+00> : vector<1x8xf32>
    %99 = vector.multi_reduction <add>, %98, %cst_62 [2] : vector<1x8x24xf32> to vector<1x8xf32>
    %100 = vector.shape_cast %99 : vector<1x8xf32> to vector<1x8x1xf32>
    %101 = tpu.reciprocal %100 {approx = true} : vector<1x8x1xf32> -> vector<1x8x1xf32>
    %102 = vector.broadcast %101 : vector<1x8x1xf32> to vector<1x8x24xf32>
    %103 = arith.mulf %98, %102 : vector<1x8x24xf32>
    %104 = arith.truncf %103 : vector<1x8x24xf32> to vector<1x8x24xbf16>
    "tpu.trace_start"() <{level = 10 : i32, message = "bqk,bkd->bqd"}> : () -> ()
    %cst_63 = arith.constant dense<0.000000e+00> : vector<1x8x8xf32>
    %105 = tpu.matmul %104, %86, %cst_63 {dimension_numbers = #tpu.dot_dimension_numbers<[2], [1], [1], [2], [0, 0, 0, 1, 1, 2], [0], [0]>} : vector<1x8x24xbf16>, vector<1x24x8xbf16>, vector<1x8x8xf32> -> vector<1x8x8xf32>
    "tpu.trace_stop"() : () -> ()
    %106 = vector.shape_cast %105 : vector<1x8x8xf32> to vector<8x8xf32>
    %107 = arith.truncf %106 : vector<8x8xf32> to vector<8x8xbf16>
    %c1_64 = arith.constant 1 : index
    %c0_65 = arith.constant 0 : index
    %c0_66 = arith.constant 0 : index
    %108 = vector.load %arg6[%c1_64, %c0_65, %c0_66] : memref<4x8x32xbf16, #tpu.memory_space<vmem>>, vector<1x8x32xbf16>
    %109 = vector.shape_cast %108 : vector<1x8x32xbf16> to vector<8x32xbf16>
    %cst_67 = arith.constant dense<0.000000e+00> : vector<8x32xf32>
    %110 = tpu.matmul %107, %109, %cst_67 {dimension_numbers = #tpu.dot_dimension_numbers<[1], [0], [0], [1], [0, 0, 1, 1], [], []>} : vector<8x8xbf16>, vector<8x32xbf16>, vector<8x32xf32> -> vector<8x32xf32>
    %111 = arith.addf %59, %110 : vector<8x32xf32>
    %c2 = arith.constant 2 : index
    %c0_68 = arith.constant 0 : index
    %c0_69 = arith.constant 0 : index
    %112 = vector.load %arg4[%c2, %c0_68, %c0_69] : memref<12x32x8xbf16, #tpu.memory_space<vmem>>, vector<1x32x8xbf16>
    %113 = vector.shape_cast %112 : vector<1x32x8xbf16> to vector<32x8xbf16>
    %cst_70 = arith.constant dense<0.000000e+00> : vector<8x8xf32>
    %114 = tpu.matmul %4, %113, %cst_70 {dimension_numbers = #tpu.dot_dimension_numbers<[1], [0], [0], [1], [0, 0, 1, 1], [], []>} : vector<8x32xbf16>, vector<32x8xbf16>, vector<8x8xf32> -> vector<8x8xf32>
    %c2_71 = arith.constant 2 : index
    %c0_72 = arith.constant 0 : index
    %c0_73 = arith.constant 0 : index
    %115 = vector.load %arg5[%c2_71, %c0_72, %c0_73] : memref<12x1x8xf32, #tpu.memory_space<vmem>>, vector<1x1x8xf32>
    %116 = vector.shape_cast %115 : vector<1x1x8xf32> to vector<1x8xf32>
    %117 = vector.broadcast %116 : vector<1x8xf32> to vector<8x8xf32>
    %118 = arith.addf %114, %117 : vector<8x8xf32>
    %119 = arith.truncf %118 : vector<8x8xf32> to vector<8x8xbf16>
    %120 = vector.shape_cast %119 : vector<8x8xbf16> to vector<1x8x8xbf16>
    %c6 = arith.constant 6 : index
    %c0_74 = arith.constant 0 : index
    %c0_75 = arith.constant 0 : index
    %121 = vector.load %arg4[%c6, %c0_74, %c0_75] : memref<12x32x8xbf16, #tpu.memory_space<vmem>>, vector<1x32x8xbf16>
    %122 = vector.shape_cast %121 : vector<1x32x8xbf16> to vector<32x8xbf16>
    %cst_76 = arith.constant dense<0.000000e+00> : vector<24x8xf32>
    %123 = tpu.matmul %6, %122, %cst_76 {dimension_numbers = #tpu.dot_dimension_numbers<[1], [0], [0], [1], [0, 0, 1, 1], [], []>} : vector<24x32xbf16>, vector<32x8xbf16>, vector<24x8xf32> -> vector<24x8xf32>
    %c6_77 = arith.constant 6 : index
    %c0_78 = arith.constant 0 : index
    %c0_79 = arith.constant 0 : index
    %124 = vector.load %arg5[%c6_77, %c0_78, %c0_79] : memref<12x1x8xf32, #tpu.memory_space<vmem>>, vector<1x1x8xf32>
    %125 = vector.shape_cast %124 : vector<1x1x8xf32> to vector<1x8xf32>
    %126 = vector.broadcast %125 : vector<1x8xf32> to vector<24x8xf32>
    %127 = arith.addf %123, %126 : vector<24x8xf32>
    %128 = arith.truncf %127 : vector<24x8xf32> to vector<24x8xbf16>
    %129 = vector.shape_cast %128 : vector<24x8xbf16> to vector<1x24x8xbf16>
    %c10 = arith.constant 10 : index
    %c0_80 = arith.constant 0 : index
    %c0_81 = arith.constant 0 : index
    %130 = vector.load %arg4[%c10, %c0_80, %c0_81] : memref<12x32x8xbf16, #tpu.memory_space<vmem>>, vector<1x32x8xbf16>
    %131 = vector.shape_cast %130 : vector<1x32x8xbf16> to vector<32x8xbf16>
    %cst_82 = arith.constant dense<0.000000e+00> : vector<24x8xf32>
    %132 = tpu.matmul %6, %131, %cst_82 {dimension_numbers = #tpu.dot_dimension_numbers<[1], [0], [0], [1], [0, 0, 1, 1], [], []>} : vector<24x32xbf16>, vector<32x8xbf16>, vector<24x8xf32> -> vector<24x8xf32>
    %c10_83 = arith.constant 10 : index
    %c0_84 = arith.constant 0 : index
    %c0_85 = arith.constant 0 : index
    %133 = vector.load %arg5[%c10_83, %c0_84, %c0_85] : memref<12x1x8xf32, #tpu.memory_space<vmem>>, vector<1x1x8xf32>
    %134 = vector.shape_cast %133 : vector<1x1x8xf32> to vector<1x8xf32>
    %135 = vector.broadcast %134 : vector<1x8xf32> to vector<24x8xf32>
    %136 = arith.addf %132, %135 : vector<24x8xf32>
    %137 = arith.truncf %136 : vector<24x8xf32> to vector<24x8xbf16>
    %138 = vector.shape_cast %137 : vector<24x8xbf16> to vector<1x24x8xbf16>
    "tpu.trace_start"() <{level = 10 : i32, message = "bqd,bkd->bqk"}> : () -> ()
    %cst_86 = arith.constant dense<0.000000e+00> : vector<1x8x24xf32>
    %139 = tpu.matmul %120, %129, %cst_86 {dimension_numbers = #tpu.dot_dimension_numbers<[2], [2], [1], [1], [0, 0, 0, 1, 1, 1], [0], [0]>} : vector<1x8x8xbf16>, vector<1x24x8xbf16>, vector<1x8x24xf32> -> vector<1x8x24xf32>
    "tpu.trace_stop"() : () -> ()
    %cst_87 = arith.constant 0.353553385 : f32
    %140 = vector.broadcast %cst_87 : f32 to vector<1x8x24xf32>
    %141 = arith.mulf %139, %140 : vector<1x8x24xf32>
    %c2_88 = arith.constant 2 : index
    %c0_89 = arith.constant 0 : index
    %c0_90 = arith.constant 0 : index
    %c0_91 = arith.constant 0 : index
    %142 = vector.load %arg3[%c2_88, %c0_89, %c0_90, %c0_91] : memref<4x1x8x24xbf16, #tpu.memory_space<vmem>>, vector<1x1x8x24xbf16>
    %143 = vector.shape_cast %142 : vector<1x1x8x24xbf16> to vector<1x8x24xbf16>
    %144 = arith.extf %143 : vector<1x8x24xbf16> to vector<1x8x24xf32>
    %145 = arith.addf %141, %144 : vector<1x8x24xf32>
    %cst_92 = arith.constant dense<0xFF800000> : vector<1x8xf32>
    %146 = vector.multi_reduction <maximumf>, %145, %cst_92 [2] : vector<1x8x24xf32> to vector<1x8xf32>
    %147 = vector.shape_cast %146 : vector<1x8xf32> to vector<1x8x1xf32>
    %148 = vector.broadcast %147 : vector<1x8x1xf32> to vector<1x8x24xf32>
    %149 = arith.subf %145, %148 : vector<1x8x24xf32>
    %150 = math.exp %149 : vector<1x8x24xf32>
    %cst_93 = arith.constant dense<0.000000e+00> : vector<1x8xf32>
    %151 = vector.multi_reduction <add>, %150, %cst_93 [2] : vector<1x8x24xf32> to vector<1x8xf32>
    %152 = vector.shape_cast %151 : vector<1x8xf32> to vector<1x8x1xf32>
    %153 = tpu.reciprocal %152 {approx = true} : vector<1x8x1xf32> -> vector<1x8x1xf32>
    %154 = vector.broadcast %153 : vector<1x8x1xf32> to vector<1x8x24xf32>
    %155 = arith.mulf %150, %154 : vector<1x8x24xf32>
    %156 = arith.truncf %155 : vector<1x8x24xf32> to vector<1x8x24xbf16>
    "tpu.trace_start"() <{level = 10 : i32, message = "bqk,bkd->bqd"}> : () -> ()
    %cst_94 = arith.constant dense<0.000000e+00> : vector<1x8x8xf32>
    %157 = tpu.matmul %156, %138, %cst_94 {dimension_numbers = #tpu.dot_dimension_numbers<[2], [1], [1], [2], [0, 0, 0, 1, 1, 2], [0], [0]>} : vector<1x8x24xbf16>, vector<1x24x8xbf16>, vector<1x8x8xf32> -> vector<1x8x8xf32>
    "tpu.trace_stop"() : () -> ()
    %158 = vector.shape_cast %157 : vector<1x8x8xf32> to vector<8x8xf32>
    %159 = arith.truncf %158 : vector<8x8xf32> to vector<8x8xbf16>
    %c2_95 = arith.constant 2 : index
    %c0_96 = arith.constant 0 : index
    %c0_97 = arith.constant 0 : index
    %160 = vector.load %arg6[%c2_95, %c0_96, %c0_97] : memref<4x8x32xbf16, #tpu.memory_space<vmem>>, vector<1x8x32xbf16>
    %161 = vector.shape_cast %160 : vector<1x8x32xbf16> to vector<8x32xbf16>
    %cst_98 = arith.constant dense<0.000000e+00> : vector<8x32xf32>
    %162 = tpu.matmul %159, %161, %cst_98 {dimension_numbers = #tpu.dot_dimension_numbers<[1], [0], [0], [1], [0, 0, 1, 1], [], []>} : vector<8x8xbf16>, vector<8x32xbf16>, vector<8x32xf32> -> vector<8x32xf32>
    %163 = arith.addf %111, %162 : vector<8x32xf32>
    %c3 = arith.constant 3 : index
    %c0_99 = arith.constant 0 : index
    %c0_100 = arith.constant 0 : index
    %164 = vector.load %arg4[%c3, %c0_99, %c0_100] : memref<12x32x8xbf16, #tpu.memory_space<vmem>>, vector<1x32x8xbf16>
    %165 = vector.shape_cast %164 : vector<1x32x8xbf16> to vector<32x8xbf16>
    %cst_101 = arith.constant dense<0.000000e+00> : vector<8x8xf32>
    %166 = tpu.matmul %4, %165, %cst_101 {dimension_numbers = #tpu.dot_dimension_numbers<[1], [0], [0], [1], [0, 0, 1, 1], [], []>} : vector<8x32xbf16>, vector<32x8xbf16>, vector<8x8xf32> -> vector<8x8xf32>
    %c3_102 = arith.constant 3 : index
    %c0_103 = arith.constant 0 : index
    %c0_104 = arith.constant 0 : index
    %167 = vector.load %arg5[%c3_102, %c0_103, %c0_104] : memref<12x1x8xf32, #tpu.memory_space<vmem>>, vector<1x1x8xf32>
    %168 = vector.shape_cast %167 : vector<1x1x8xf32> to vector<1x8xf32>
    %169 = vector.broadcast %168 : vector<1x8xf32> to vector<8x8xf32>
    %170 = arith.addf %166, %169 : vector<8x8xf32>
    %171 = arith.truncf %170 : vector<8x8xf32> to vector<8x8xbf16>
    %172 = vector.shape_cast %171 : vector<8x8xbf16> to vector<1x8x8xbf16>
    %c7 = arith.constant 7 : index
    %c0_105 = arith.constant 0 : index
    %c0_106 = arith.constant 0 : index
    %173 = vector.load %arg4[%c7, %c0_105, %c0_106] : memref<12x32x8xbf16, #tpu.memory_space<vmem>>, vector<1x32x8xbf16>
    %174 = vector.shape_cast %173 : vector<1x32x8xbf16> to vector<32x8xbf16>
    %cst_107 = arith.constant dense<0.000000e+00> : vector<24x8xf32>
    %175 = tpu.matmul %6, %174, %cst_107 {dimension_numbers = #tpu.dot_dimension_numbers<[1], [0], [0], [1], [0, 0, 1, 1], [], []>} : vector<24x32xbf16>, vector<32x8xbf16>, vector<24x8xf32> -> vector<24x8xf32>
    %c7_108 = arith.constant 7 : index
    %c0_109 = arith.constant 0 : index
    %c0_110 = arith.constant 0 : index
    %176 = vector.load %arg5[%c7_108, %c0_109, %c0_110] : memref<12x1x8xf32, #tpu.memory_space<vmem>>, vector<1x1x8xf32>
    %177 = vector.shape_cast %176 : vector<1x1x8xf32> to vector<1x8xf32>
    %178 = vector.broadcast %177 : vector<1x8xf32> to vector<24x8xf32>
    %179 = arith.addf %175, %178 : vector<24x8xf32>
    %180 = arith.truncf %179 : vector<24x8xf32> to vector<24x8xbf16>
    %181 = vector.shape_cast %180 : vector<24x8xbf16> to vector<1x24x8xbf16>
    %c11 = arith.constant 11 : index
    %c0_111 = arith.constant 0 : index
    %c0_112 = arith.constant 0 : index
    %182 = vector.load %arg4[%c11, %c0_111, %c0_112] : memref<12x32x8xbf16, #tpu.memory_space<vmem>>, vector<1x32x8xbf16>
    %183 = vector.shape_cast %182 : vector<1x32x8xbf16> to vector<32x8xbf16>
    %cst_113 = arith.constant dense<0.000000e+00> : vector<24x8xf32>
    %184 = tpu.matmul %6, %183, %cst_113 {dimension_numbers = #tpu.dot_dimension_numbers<[1], [0], [0], [1], [0, 0, 1, 1], [], []>} : vector<24x32xbf16>, vector<32x8xbf16>, vector<24x8xf32> -> vector<24x8xf32>
    %c11_114 = arith.constant 11 : index
    %c0_115 = arith.constant 0 : index
    %c0_116 = arith.constant 0 : index
    %185 = vector.load %arg5[%c11_114, %c0_115, %c0_116] : memref<12x1x8xf32, #tpu.memory_space<vmem>>, vector<1x1x8xf32>
    %186 = vector.shape_cast %185 : vector<1x1x8xf32> to vector<1x8xf32>
    %187 = vector.broadcast %186 : vector<1x8xf32> to vector<24x8xf32>
    %188 = arith.addf %184, %187 : vector<24x8xf32>
    %189 = arith.truncf %188 : vector<24x8xf32> to vector<24x8xbf16>
    %190 = vector.shape_cast %189 : vector<24x8xbf16> to vector<1x24x8xbf16>
    "tpu.trace_start"() <{level = 10 : i32, message = "bqd,bkd->bqk"}> : () -> ()
    %cst_117 = arith.constant dense<0.000000e+00> : vector<1x8x24xf32>
    %191 = tpu.matmul %172, %181, %cst_117 {dimension_numbers = #tpu.dot_dimension_numbers<[2], [2], [1], [1], [0, 0, 0, 1, 1, 1], [0], [0]>} : vector<1x8x8xbf16>, vector<1x24x8xbf16>, vector<1x8x24xf32> -> vector<1x8x24xf32>
    "tpu.trace_stop"() : () -> ()
    %cst_118 = arith.constant 0.353553385 : f32
    %192 = vector.broadcast %cst_118 : f32 to vector<1x8x24xf32>
    %193 = arith.mulf %191, %192 : vector<1x8x24xf32>
    %c3_119 = arith.constant 3 : index
    %c0_120 = arith.constant 0 : index
    %c0_121 = arith.constant 0 : index
    %c0_122 = arith.constant 0 : index
    %194 = vector.load %arg3[%c3_119, %c0_120, %c0_121, %c0_122] : memref<4x1x8x24xbf16, #tpu.memory_space<vmem>>, vector<1x1x8x24xbf16>
    %195 = vector.shape_cast %194 : vector<1x1x8x24xbf16> to vector<1x8x24xbf16>
    %196 = arith.extf %195 : vector<1x8x24xbf16> to vector<1x8x24xf32>
    %197 = arith.addf %193, %196 : vector<1x8x24xf32>
    %cst_123 = arith.constant dense<0xFF800000> : vector<1x8xf32>
    %198 = vector.multi_reduction <maximumf>, %197, %cst_123 [2] : vector<1x8x24xf32> to vector<1x8xf32>
    %199 = vector.shape_cast %198 : vector<1x8xf32> to vector<1x8x1xf32>
    %200 = vector.broadcast %199 : vector<1x8x1xf32> to vector<1x8x24xf32>
    %201 = arith.subf %197, %200 : vector<1x8x24xf32>
    %202 = math.exp %201 : vector<1x8x24xf32>
    %cst_124 = arith.constant dense<0.000000e+00> : vector<1x8xf32>
    %203 = vector.multi_reduction <add>, %202, %cst_124 [2] : vector<1x8x24xf32> to vector<1x8xf32>
    %204 = vector.shape_cast %203 : vector<1x8xf32> to vector<1x8x1xf32>
    %205 = tpu.reciprocal %204 {approx = true} : vector<1x8x1xf32> -> vector<1x8x1xf32>
    %206 = vector.broadcast %205 : vector<1x8x1xf32> to vector<1x8x24xf32>
    %207 = arith.mulf %202, %206 : vector<1x8x24xf32>
    %208 = arith.truncf %207 : vector<1x8x24xf32> to vector<1x8x24xbf16>
    "tpu.trace_start"() <{level = 10 : i32, message = "bqk,bkd->bqd"}> : () -> ()
    %cst_125 = arith.constant dense<0.000000e+00> : vector<1x8x8xf32>
    %209 = tpu.matmul %208, %190, %cst_125 {dimension_numbers = #tpu.dot_dimension_numbers<[2], [1], [1], [2], [0, 0, 0, 1, 1, 2], [0], [0]>} : vector<1x8x24xbf16>, vector<1x24x8xbf16>, vector<1x8x8xf32> -> vector<1x8x8xf32>
    "tpu.trace_stop"() : () -> ()
    %210 = vector.shape_cast %209 : vector<1x8x8xf32> to vector<8x8xf32>
    %211 = arith.truncf %210 : vector<8x8xf32> to vector<8x8xbf16>
    %c3_126 = arith.constant 3 : index
    %c0_127 = arith.constant 0 : index
    %c0_128 = arith.constant 0 : index
    %212 = vector.load %arg6[%c3_126, %c0_127, %c0_128] : memref<4x8x32xbf16, #tpu.memory_space<vmem>>, vector<1x8x32xbf16>
    %213 = vector.shape_cast %212 : vector<1x8x32xbf16> to vector<8x32xbf16>
    %cst_129 = arith.constant dense<0.000000e+00> : vector<8x32xf32>
    %214 = tpu.matmul %211, %213, %cst_129 {dimension_numbers = #tpu.dot_dimension_numbers<[1], [0], [0], [1], [0, 0, 1, 1], [], []>} : vector<8x8xbf16>, vector<8x32xbf16>, vector<8x32xf32> -> vector<8x32xf32>
    %215 = arith.addf %163, %214 : vector<8x32xf32>
    %216 = arith.addf %1, %215 : vector<8x32xf32>
    %c0_130 = arith.constant 0 : index
    %c0_131 = arith.constant 0 : index
    %217 = vector.load %arg9[%c0_130, %c0_131] : memref<6x32xf32, #tpu.memory_space<vmem>>, vector<1x32xf32>
    %218 = vector.broadcast %217 : vector<1x32xf32> to vector<8x32xf32>
    %219 = arith.addf %216, %218 : vector<8x32xf32>
    %c1_132 = arith.constant 1 : index
    %c0_133 = arith.constant 0 : index
    %220 = vector.load %arg9[%c1_132, %c0_133] : memref<6x32xf32, #tpu.memory_space<vmem>>, vector<1x32xf32>
    %c2_134 = arith.constant 2 : index
    %c0_135 = arith.constant 0 : index
    %221 = vector.load %arg9[%c2_134, %c0_135] : memref<6x32xf32, #tpu.memory_space<vmem>>, vector<1x32xf32>
    %cst_136 = arith.constant dense<0.000000e+00> : vector<8xf32>
    %222 = vector.multi_reduction <add>, %219, %cst_136 [1] : vector<8x32xf32> to vector<8xf32>
    %223 = vector.shape_cast %222 : vector<8xf32> to vector<8x1xf32>
    %cst_137 = arith.constant 3.200000e+01 : f32
    %224 = vector.broadcast %cst_137 : f32 to vector<8x1xf32>
    %225 = arith.divf %223, %224 : vector<8x1xf32>
    %226 = vector.broadcast %225 : vector<8x1xf32> to vector<8x32xf32>
    %227 = arith.subf %219, %226 : vector<8x32xf32>
    %228 = arith.mulf %227, %227 : vector<8x32xf32>
    %cst_138 = arith.constant dense<0.000000e+00> : vector<8xf32>
    %229 = vector.multi_reduction <add>, %228, %cst_138 [1] : vector<8x32xf32> to vector<8xf32>
    %230 = vector.shape_cast %229 : vector<8xf32> to vector<8x1xf32>
    %cst_139 = arith.constant 3.200000e+01 : f32
    %231 = vector.broadcast %cst_139 : f32 to vector<8x1xf32>
    %232 = arith.divf %230, %231 : vector<8x1xf32>
    %233 = vector.broadcast %225 : vector<8x1xf32> to vector<8x32xf32>
    %234 = arith.subf %219, %233 : vector<8x32xf32>
    %cst_140 = arith.constant 9.99999974E-6 : f32
    %235 = vector.broadcast %cst_140 : f32 to vector<8x1xf32>
    %236 = arith.addf %232, %235 : vector<8x1xf32>
    %237 = math.rsqrt %236 : vector<8x1xf32>
    %238 = vector.broadcast %237 : vector<8x1xf32> to vector<8x32xf32>
    %239 = arith.mulf %234, %238 : vector<8x32xf32>
    %240 = vector.broadcast %220 : vector<1x32xf32> to vector<8x32xf32>
    %241 = arith.mulf %239, %240 : vector<8x32xf32>
    %242 = vector.broadcast %221 : vector<1x32xf32> to vector<8x32xf32>
    %243 = arith.addf %241, %242 : vector<8x32xf32>
    %244 = arith.truncf %243 : vector<8x32xf32> to vector<8x32xbf16>
    %c0_141 = arith.constant 0 : index
    %c0_142 = arith.constant 0 : index
    %245 = vector.load %arg7[%c0_141, %c0_142] : memref<32x64xbf16, #tpu.memory_space<vmem>>, vector<32x64xbf16>
    %cst_143 = arith.constant dense<0.000000e+00> : vector<8x64xf32>
    %246 = tpu.matmul %244, %245, %cst_143 {dimension_numbers = #tpu.dot_dimension_numbers<[1], [0], [0], [1], [0, 0, 1, 1], [], []>} : vector<8x32xbf16>, vector<32x64xbf16>, vector<8x64xf32> -> vector<8x64xf32>
    %c0_144 = arith.constant 0 : index
    %c0_145 = arith.constant 0 : index
    %247 = vector.load %arg10[%c0_144, %c0_145] : memref<1x64xf32, #tpu.memory_space<vmem>>, vector<1x64xf32>
    %248 = vector.broadcast %247 : vector<1x64xf32> to vector<8x64xf32>
    %249 = arith.addf %246, %248 : vector<8x64xf32>
    %cst_146 = arith.constant 0.000000e+00 : f32
    %250 = vector.broadcast %cst_146 : f32 to vector<8x64xf32>
    %251 = arith.maximumf %249, %250 : vector<8x64xf32>
    %252 = arith.truncf %251 : vector<8x64xf32> to vector<8x64xbf16>
    %c0_147 = arith.constant 0 : index
    %c0_148 = arith.constant 0 : index
    %253 = vector.load %arg8[%c0_147, %c0_148] : memref<64x32xbf16, #tpu.memory_space<vmem>>, vector<64x32xbf16>
    %cst_149 = arith.constant dense<0.000000e+00> : vector<8x32xf32>
    %254 = tpu.matmul %252, %253, %cst_149 {dimension_numbers = #tpu.dot_dimension_numbers<[1], [0], [0], [1], [0, 0, 1, 1], [], []>} : vector<8x64xbf16>, vector<64x32xbf16>, vector<8x32xf32> -> vector<8x32xf32>
    %c3_150 = arith.constant 3 : index
    %c0_151 = arith.constant 0 : index
    %255 = vector.load %arg9[%c3_150, %c0_151] : memref<6x32xf32, #tpu.memory_space<vmem>>, vector<1x32xf32>
    %256 = vector.broadcast %255 : vector<1x32xf32> to vector<8x32xf32>
    %257 = arith.addf %254, %256 : vector<8x32xf32>
    %258 = arith.addf %243, %257 : vector<8x32xf32>
    %c4_152 = arith.constant 4 : index
    %c0_153 = arith.constant 0 : index
    %259 = vector.load %arg9[%c4_152, %c0_153] : memref<6x32xf32, #tpu.memory_space<vmem>>, vector<1x32xf32>
    %c5_154 = arith.constant 5 : index
    %c0_155 = arith.constant 0 : index
    %260 = vector.load %arg9[%c5_154, %c0_155] : memref<6x32xf32, #tpu.memory_space<vmem>>, vector<1x32xf32>
    %cst_156 = arith.constant dense<0.000000e+00> : vector<8xf32>
    %261 = vector.multi_reduction <add>, %258, %cst_156 [1] : vector<8x32xf32> to vector<8xf32>
    %262 = vector.shape_cast %261 : vector<8xf32> to vector<8x1xf32>
    %cst_157 = arith.constant 3.200000e+01 : f32
    %263 = vector.broadcast %cst_157 : f32 to vector<8x1xf32>
    %264 = arith.divf %262, %263 : vector<8x1xf32>
    %265 = vector.broadcast %264 : vector<8x1xf32> to vector<8x32xf32>
    %266 = arith.subf %258, %265 : vector<8x32xf32>
    %267 = arith.mulf %266, %266 : vector<8x32xf32>
    %cst_158 = arith.constant dense<0.000000e+00> : vector<8xf32>
    %268 = vector.multi_reduction <add>, %267, %cst_158 [1] : vector<8x32xf32> to vector<8xf32>
    %269 = vector.shape_cast %268 : vector<8xf32> to vector<8x1xf32>
    %cst_159 = arith.constant 3.200000e+01 : f32
    %270 = vector.broadcast %cst_159 : f32 to vector<8x1xf32>
    %271 = arith.divf %269, %270 : vector<8x1xf32>
    %272 = vector.broadcast %264 : vector<8x1xf32> to vector<8x32xf32>
    %273 = arith.subf %258, %272 : vector<8x32xf32>
    %cst_160 = arith.constant 9.99999974E-6 : f32
    %274 = vector.broadcast %cst_160 : f32 to vector<8x1xf32>
    %275 = arith.addf %271, %274 : vector<8x1xf32>
    %276 = math.rsqrt %275 : vector<8x1xf32>
    %277 = vector.broadcast %276 : vector<8x1xf32> to vector<8x32xf32>
    %278 = arith.mulf %273, %277 : vector<8x32xf32>
    %279 = vector.broadcast %259 : vector<1x32xf32> to vector<8x32xf32>
    %280 = arith.mulf %278, %279 : vector<8x32xf32>
    %281 = vector.broadcast %260 : vector<1x32xf32> to vector<8x32xf32>
    %282 = arith.addf %280, %281 : vector<8x32xf32>
    %283 = vector.shape_cast %282 : vector<8x32xf32> to vector<1x8x32xf32>
    %c0_161 = arith.constant 0 : index
    %c0_162 = arith.constant 0 : index
    %c0_163 = arith.constant 0 : index
    %284 = vector.load %arg11[%c0_161, %c0_162, %c0_163] : memref<1x8x32xf32, #tpu.memory_space<vmem>>, vector<1x8x32xf32>
    tpu.vector_store %arg11[%c0_161, %c0_162, %c0_163], %283 {strides = array<i32>} : memref<1x8x32xf32, #tpu.memory_space<vmem>>, vector<1x8x32xf32>,
    return
  }
  func.func @transform_0(%arg0: i32) -> (i32, i32, i32) {
    %c0_i32 = arith.constant 0 : i32
    %c0_i32_0 = arith.constant 0 : i32
    %c0_i32_1 = arith.constant 0 : i32
    return %arg0, %c0_i32, %c0_i32_0 : i32, i32, i32
  }
  func.func @transform_1(%arg0: i32) -> (i32, i32, i32) {
    %c0_i32 = arith.constant 0 : i32
    %c0_i32_0 = arith.constant 0 : i32
    %c0_i32_1 = arith.constant 0 : i32
    return %arg0, %c0_i32, %c0_i32_0 : i32, i32, i32
  }
  func.func @transform_2(%arg0: i32) -> (i32, i32, i32, i32) {
    %c0_i32 = arith.constant 0 : i32
    %c0_i32_0 = arith.constant 0 : i32
    %c0_i32_1 = arith.constant 0 : i32
    %c0_i32_2 = arith.constant 0 : i32
    return %c0_i32, %arg0, %c0_i32_0, %c0_i32_1 : i32, i32, i32, i32
  }
  func.func @transform_3(%arg0: i32) -> (i32, i32, i32) {
    %c0_i32 = arith.constant 0 : i32
    %c0_i32_0 = arith.constant 0 : i32
    %c0_i32_1 = arith.constant 0 : i32
    %c0_i32_2 = arith.constant 0 : i32
    return %c0_i32, %c0_i32_0, %c0_i32_1 : i32, i32, i32
  }
  func.func @transform_4(%arg0: i32) -> (i32, i32, i32) {
    %c0_i32 = arith.constant 0 : i32
    %c0_i32_0 = arith.constant 0 : i32
    %c0_i32_1 = arith.constant 0 : i32
    %c0_i32_2 = arith.constant 0 : i32
    return %c0_i32, %c0_i32_0, %c0_i32_1 : i32, i32, i32
  }
  func.func @transform_5(%arg0: i32) -> (i32, i32, i32) {
    %c0_i32 = arith.constant 0 : i32
    %c0_i32_0 = arith.constant 0 : i32
    %c0_i32_1 = arith.constant 0 : i32
    %c0_i32_2 = arith.constant 0 : i32
    return %c0_i32, %c0_i32_0, %c0_i32_1 : i32, i32, i32
  }
  func.func @transform_6(%arg0: i32) -> (i32, i32) {
    %c0_i32 = arith.constant 0 : i32
    %c0_i32_0 = arith.constant 0 : i32
    %c0_i32_1 = arith.constant 0 : i32
    return %c0_i32, %c0_i32_0 : i32, i32
  }
  func.func @transform_7(%arg0: i32) -> (i32, i32) {
    %c0_i32 = arith.constant 0 : i32
    %c0_i32_0 = arith.constant 0 : i32
    %c0_i32_1 = arith.constant 0 : i32
    return %c0_i32, %c0_i32_0 : i32, i32
  }
  func.func @transform_8(%arg0: i32) -> (i32, i32) {
    %c0_i32 = arith.constant 0 : i32
    %c0_i32_0 = arith.constant 0 : i32
    %c0_i32_1 = arith.constant 0 : i32
    return %c0_i32, %c0_i32_0 : i32, i32
  }
  func.func @transform_9(%arg0: i32) -> (i32, i32) {
    %c0_i32 = arith.constant 0 : i32
    %c0_i32_0 = arith.constant 0 : i32
    %c0_i32_1 = arith.constant 0 : i32
    return %c0_i32, %c0_i32_0 : i32, i32
  }
  func.func @transform_10(%arg0: i32) -> (i32, i32, i32) {
    %c0_i32 = arith.constant 0 : i32
    %c0_i32_0 = arith.constant 0 : i32
    %c0_i32_1 = arith.constant 0 : i32
    return %arg0, %c0_i32, %c0_i32_0 : i32, i32, i32
  }
}

</mosaic_0001>

<llo_original>
// kernel: encoder_forward.2
$region0: #{encoder_forward.2}
  #allocation0 [shape = 'u32[]', space=smem, size = 0x4, offset = 0x4, fixed_abs, tag = 'smem constant byte address 0x4 - core index']
  #allocation1 [shape = 'u32[144,128]{1,0:T(1,128)}', space=vmem, size = 0x12000, scoped, tag = 'internal scratch']
  %s0 = inlined_call_operand.vmem [shape: f32[2,8,32], index: 0, kind: input, shape index: {}]
  %s1 = inlined_call_operand.vmem [shape: f32[2,16,32], index: 1, kind: input, shape index: {}]
  %s2 = inlined_call_operand.vmem [shape: bf16[4,2,8,24], index: 2, kind: input, shape index: {}]
  %s3 = inlined_call_operand.vmem [shape: bf16[12,32,8], index: 3, kind: input, shape index: {}]
  %s4 = inlined_call_operand.vmem [shape: f32[12,1,8], index: 4, kind: input, shape index: {}]
  %s5 = inlined_call_operand.vmem [shape: bf16[4,8,32], index: 5, kind: input, shape index: {}]
  %s6 = inlined_call_operand.vmem [shape: bf16[32,64], index: 6, kind: input, shape index: {}]
  %s7 = inlined_call_operand.vmem [shape: bf16[64,32], index: 7, kind: input, shape index: {}]
  %s8 = inlined_call_operand.vmem [shape: f32[6,32], index: 8, kind: input, shape index: {}]
  %s9 = inlined_call_operand.vmem [shape: f32[1,64], index: 9, kind: input, shape index: {}]
  %s10 = inlined_call_operand.vmem [shape: f32[2,8,32], index: 10, kind: output, shape index: {}]
  %s11 = sld [smem:[#allocation0]]
  $region114: #{encoder_forward.2} parent=0
    _
  %s13 = ssub.s32 1, %s11
  %s14 = scalar_select 0, %s13, %s11
  $region1: #{encoder_forward.2} parent=0
    #allocation2 [shape = 'u8[16384]{0}', space=vmem, size = 0x4000, scoped, tag = 'input window, operand 2']
    loop: start=0, step=1, limit=4
    $region2: #{encoder_forward.2} parent=1 // loop_pre_header
      _
    $region3: #{encoder_forward.2} parent=1 // loop_header
      %s16 = sphi 0, %s20
      %p17 = scmp.ge.s32.totalorder %s16, 4
      %s26 = sphi 0, %s28
      %s29 = sphi 0, %s26
      %s30 = sphi 0, %s29
      %s46 = sphi 0, %s30
      %s52 = sphi 0, %s54
      %s55 = sphi 0, %s52
      %s56 = sphi 0, %s55
      %s72 = sphi 0, %s56
      %s78 = sphi 0, %s80
      %s81 = sphi 0, %s78
      %s82 = sphi 0, %s81
      %s98 = sphi 0, %s82
      %s102 = sphi 0, %s102
      %s104 = sphi 0, %s102
      %s105 = sphi 0, %s104
      %s119 = sphi 0, %s105
      %s123 = sphi 0, %s123
      %s125 = sphi 0, %s123
      %s126 = sphi 0, %s125
      %s140 = sphi 0, %s126
      %s144 = sphi 0, %s144
      %s146 = sphi 0, %s144
      %s147 = sphi 0, %s146
      %s161 = sphi 0, %s147
      %s165 = sphi 0, %s165
      %s167 = sphi 0, %s165
      %s168 = sphi 0, %s167
      %s182 = sphi 0, %s168
      %s186 = sphi 0, %s186
      %s188 = sphi 0, %s186
      %s189 = sphi 0, %s188
      %s203 = sphi 0, %s189
      %s207 = sphi 0, %s207
      %s209 = sphi 0, %s207
      %s210 = sphi 0, %s209
      %s224 = sphi 0, %s210
      %s228 = sphi 0, %s228
      %s230 = sphi 0, %s228
      %s231 = sphi 0, %s230
      %s245 = sphi 0, %s231
      %s251 = sphi 0, %s253
      %s254 = sphi 0, %s251
      %s255 = sphi 0, %s254
      %s271 = sphi 0, %s255
    $region4: #{encoder_forward.2} parent=1 // loop_header_branch
      %19 = sbr.rel (%p17) target = $region8
    $region5: #{encoder_forward.2} parent=1 // loop_body
      %s21 = ssub.s32 %s16, 1
      %s22 = ssub.s32 %s16, 2
      %s23 = sadd.s32 %s16, 1
      %s24 = ssub.s32 %s16, %s23
      %p25 = scmp.eq.s32.totalorder %s24, 0
      %s27 = sadd.s32 %s26, 1
      %s28 = scalar_select %p25, %s26, %s27
      %p31 = pneg %p25
      %p32 = scmp.eq.s32.totalorder %s16, 1
      %p33 = por %p31, %p32
      %p34 = scmp.ne.s32.totalorder %s26, %s29
      %p35 = scmp.eq.s32.totalorder %s16, 0
      %p36 = por %p34, %p35
      %p37 = scmp.ne.s32.totalorder %s26, %s29
      %p38 = scmp.eq.s32.totalorder %s21, 1
      %p39 = por %p37, %p38
      %p40 = scmp.ne.s32.totalorder %s29, %s30
      %p41 = scmp.eq.s32.totalorder %s21, 0
      %p42 = por %p40, %p41
      %p43 = scmp.ne.s32.totalorder %s29, %s30
      %p44 = scmp.eq.s32.totalorder %s22, 1
      %p45 = por %p43, %p44
      %p47 = scmp.ne.s32.totalorder %s30, %s46
      %p48 = scmp.eq.s32.totalorder %s22, 0
      %p49 = por %p47, %p48
      %s50 = ssub.s32 %s16, %s23
      %p51 = scmp.eq.s32.totalorder %s50, 0
      %s53 = sadd.s32 %s52, 1
      %s54 = scalar_select %p51, %s52, %s53
      %p57 = pneg %p51
      %p58 = scmp.eq.s32.totalorder %s16, 1
      %p59 = por %p57, %p58
      %p60 = scmp.ne.s32.totalorder %s52, %s55
      %p61 = scmp.eq.s32.totalorder %s16, 0
      %p62 = por %p60, %p61
      %p63 = scmp.ne.s32.totalorder %s52, %s55
      %p64 = scmp.eq.s32.totalorder %s21, 1
      %p65 = por %p63, %p64
      %p66 = scmp.ne.s32.totalorder %s55, %s56
      %p67 = scmp.eq.s32.totalorder %s21, 0
      %p68 = por %p66, %p67
      %p69 = scmp.ne.s32.totalorder %s55, %s56
      %p70 = scmp.eq.s32.totalorder %s22, 1
      %p71 = por %p69, %p70
      %p73 = scmp.ne.s32.totalorder %s56, %s72
      %p74 = scmp.eq.s32.totalorder %s22, 0
      %p75 = por %p73, %p74
      %s76 = ssub.s32 %s16, %s23
      %p77 = scmp.eq.s32.totalorder %s76, 0
      %s79 = sadd.s32 %s78, 1
      %s80 = scalar_select %p77, %s78, %s79
      %p83 = pneg %p77
      %p84 = scmp.eq.s32.totalorder %s16, 1
      %p85 = por %p83, %p84
      %p86 = scmp.ne.s32.totalorder %s78, %s81
      %p87 = scmp.eq.s32.totalorder %s16, 0
      %p88 = por %p86, %p87
      %p89 = scmp.ne.s32.totalorder %s78, %s81
      %p90 = scmp.eq.s32.totalorder %s21, 1
      %p91 = por %p89, %p90
      %p92 = scmp.ne.s32.totalorder %s81, %s82
      %p93 = scmp.eq.s32.totalorder %s21, 0
      %p94 = por %p92, %p93
      %p95 = scmp.ne.s32.totalorder %s81, %s82
      %p96 = scmp.eq.s32.totalorder %s22, 1
      %p97 = por %p95, %p96
      %p99 = scmp.ne.s32.totalorder %s82, %s98
      %p100 = scmp.eq.s32.totalorder %s22, 0
      %p101 = por %p99, %p100
      %s103 = sadd.s32 %s102, 1
      %p106 = scmp.eq.s32.totalorder %s16, 1
      %p107 = scmp.ne.s32.totalorder %s102, %s104
      %p108 = scmp.eq.s32.totalorder %s16, 0
      %p109 = por %p107, %p108
      %p110 = scmp.ne.s32.totalorder %s102, %s104
      %p111 = scmp.eq.s32.totalorder %s21, 1
      %p112 = por %p110, %p111
      %p113 = scmp.ne.s32.totalorder %s104, %s105
      %p114 = scmp.eq.s32.totalorder %s21, 0
      %p115 = por %p113, %p114
      %p116 = scmp.ne.s32.totalorder %s104, %s105
      %p117 = scmp.eq.s32.totalorder %s22, 1
      %p118 = por %p116, %p117
      %p120 = scmp.ne.s32.totalorder %s105, %s119
      %p121 = scmp.eq.s32.totalorder %s22, 0
      %p122 = por %p120, %p121
      %s124 = sadd.s32 %s123, 1
      %p127 = scmp.eq.s32.totalorder %s16, 1
      %p128 = scmp.ne.s32.totalorder %s123, %s125
      %p129 = scmp.eq.s32.totalorder %s16, 0
      %p130 = por %p128, %p129
      %p131 = scmp.ne.s32.totalorder %s123, %s125
      %p132 = scmp.eq.s32.totalorder %s21, 1
      %p133 = por %p131, %p132
      %p134 = scmp.ne.s32.totalorder %s125, %s126
      %p135 = scmp.eq.s32.totalorder %s21, 0
      %p136 = por %p134, %p135
      %p137 = scmp.ne.s32.totalorder %s125, %s126
      %p138 = scmp.eq.s32.totalorder %s22, 1
      %p139 = por %p137, %p138
      %p141 = scmp.ne.s32.totalorder %s126, %s140
      %p142 = scmp.eq.s32.totalorder %s22, 0
      %p143 = por %p141, %p142
      %s145 = sadd.s32 %s144, 1
      %p148 = scmp.eq.s32.totalorder %s16, 1
      %p149 = scmp.ne.s32.totalorder %s144, %s146
      %p150 = scmp.eq.s32.totalorder %s16, 0
      %p151 = por %p149, %p150
      %p152 = scmp.ne.s32.totalorder %s144, %s146
      %p153 = scmp.eq.s32.totalorder %s21, 1
      %p154 = por %p152, %p153
      %p155 = scmp.ne.s32.totalorder %s146, %s147
      %p156 = scmp.eq.s32.totalorder %s21, 0
      %p157 = por %p155, %p156
      %p158 = scmp.ne.s32.totalorder %s146, %s147
      %p159 = scmp.eq.s32.totalorder %s22, 1
      %p160 = por %p158, %p159
      %p162 = scmp.ne.s32.totalorder %s147, %s161
      %p163 = scmp.eq.s32.totalorder %s22, 0
      %p164 = por %p162, %p163
      %s166 = sadd.s32 %s165, 1
      %p169 = scmp.eq.s32.totalorder %s16, 1
      %p170 = scmp.ne.s32.totalorder %s165, %s167
      %p171 = scmp.eq.s32.totalorder %s16, 0
      %p172 = por %p170, %p171
      %p173 = scmp.ne.s32.totalorder %s165, %s167
      %p174 = scmp.eq.s32.totalorder %s21, 1
      %p175 = por %p173, %p174
      %p176 = scmp.ne.s32.totalorder %s167, %s168
      %p177 = scmp.eq.s32.totalorder %s21, 0
      %p178 = por %p176, %p177
      %p179 = scmp.ne.s32.totalorder %s167, %s168
      %p180 = scmp.eq.s32.totalorder %s22, 1
      %p181 = por %p179, %p180
      %p183 = scmp.ne.s32.totalorder %s168, %s182
      %p184 = scmp.eq.s32.totalorder %s22, 0
      %p185 = por %p183, %p184
      %s187 = sadd.s32 %s186, 1
      %p190 = scmp.eq.s32.totalorder %s16, 1
      %p191 = scmp.ne.s32.totalorder %s186, %s188
      %p192 = scmp.eq.s32.totalorder %s16, 0
      %p193 = por %p191, %p192
      %p194 = scmp.ne.s32.totalorder %s186, %s188
      %p195 = scmp.eq.s32.totalorder %s21, 1
      %p196 = por %p194, %p195
      %p197 = scmp.ne.s32.totalorder %s188, %s189
      %p198 = scmp.eq.s32.totalorder %s21, 0
      %p199 = por %p197, %p198
      %p200 = scmp.ne.s32.totalorder %s188, %s189
      %p201 = scmp.eq.s32.totalorder %s22, 1
      %p202 = por %p200, %p201
      %p204 = scmp.ne.s32.totalorder %s189, %s203
      %p205 = scmp.eq.s32.totalorder %s22, 0
      %p206 = por %p204, %p205
      %s208 = sadd.s32 %s207, 1
      %p211 = scmp.eq.s32.totalorder %s16, 1
      %p212 = scmp.ne.s32.totalorder %s207, %s209
      %p213 = scmp.eq.s32.totalorder %s16, 0
      %p214 = por %p212, %p213
      %p215 = scmp.ne.s32.totalorder %s207, %s209
      %p216 = scmp.eq.s32.totalorder %s21, 1
      %p217 = por %p215, %p216
      %p218 = scmp.ne.s32.totalorder %s209, %s210
      %p219 = scmp.eq.s32.totalorder %s21, 0
      %p220 = por %p218, %p219
      %p221 = scmp.ne.s32.totalorder %s209, %s210
      %p222 = scmp.eq.s32.totalorder %s22, 1
      %p223 = por %p221, %p222
      %p225 = scmp.ne.s32.totalorder %s210, %s224
      %p226 = scmp.eq.s32.totalorder %s22, 0
      %p227 = por %p225, %p226
      %s229 = sadd.s32 %s228, 1
      %p232 = scmp.eq.s32.totalorder %s16, 1
      %p233 = scmp.ne.s32.totalorder %s228, %s230
      %p234 = scmp.eq.s32.totalorder %s16, 0
      %p235 = por %p233, %p234
      %p236 = scmp.ne.s32.totalorder %s228, %s230
      %p237 = scmp.eq.s32.totalorder %s21, 1
      %p238 = por %p236, %p237
      %p239 = scmp.ne.s32.totalorder %s230, %s231
      %p240 = scmp.eq.s32.totalorder %s21, 0
      %p241 = por %p239, %p240
      %p242 = scmp.ne.s32.totalorder %s230, %s231
      %p243 = scmp.eq.s32.totalorder %s22, 1
      %p244 = por %p242, %p243
      %p246 = scmp.ne.s32.totalorder %s231, %s245
      %p247 = scmp.eq.s32.totalorder %s22, 0
      %p248 = por %p246, %p247
      %s249 = ssub.s32 %s16, %s23
      %p250 = scmp.eq.s32.totalorder %s249, 0
      %s252 = sadd.s32 %s251, 1
      %s253 = scalar_select %p250, %s251, %s252
      %p256 = pneg %p250
      %p257 = scmp.eq.s32.totalorder %s16, 1
      %p258 = por %p256, %p257
      %p259 = scmp.ne.s32.totalorder %s251, %s254
      %p260 = scmp.eq.s32.totalorder %s16, 0
      %p261 = por %p259, %p260
      %p262 = scmp.ne.s32.totalorder %s251, %s254
      %p263 = scmp.eq.s32.totalorder %s21, 1
      %p264 = por %p262, %p263
      %p265 = scmp.ne.s32.totalorder %s254, %s255
      %p266 = scmp.eq.s32.totalorder %s21, 0
      %p267 = por %p265, %p266
      %p268 = scmp.ne.s32.totalorder %s254, %s255
      %p269 = scmp.eq.s32.totalorder %s22, 1
      %p270 = por %p268, %p269
      %p272 = scmp.ne.s32.totalorder %s255, %s271
      %p273 = scmp.eq.s32.totalorder %s22, 0
      %p274 = por %p272, %p273
      %p275 = scmp.le.s32.totalorder 1, %s16
      %p276 = scmp.lt.s32.totalorder %s16, 3
      %p277 = pnand %p275, %p276
      %p278 = pneg %p277
      // Predicated region
      $region9: #{encoder_forward.2} parent=5 // pred_check
        _
      $region10: #{encoder_forward.2} parent=5 // pred_check_branch
        %280 = sbr.rel (%p277) target = $region12
      $region11: #{encoder_forward.2} parent=5 // pred_region
        %s281 = ssub.s32 %s16, 1
        // Predicated region
        $region13: #{encoder_forward.2} parent=11 // pred_check
          %p282 = pneg %p115
        $region14: #{encoder_forward.2} parent=11 // pred_check_branch
          %284 = sbr.rel (%p282) target = $region16
        $region15: #{encoder_forward.2} parent=11 // pred_region
          _
        $region16: #{encoder_forward.2} parent=11 // pred_fallthru
          _
        // Predicated region
        $region17: #{encoder_forward.2} parent=11 // pred_check
          %p285 = pneg %p136
        $region18: #{encoder_forward.2} parent=11 // pred_check_branch
          %287 = sbr.rel (%p285) target = $region20
        $region19: #{encoder_forward.2} parent=11 // pred_region
          _
        $region20: #{encoder_forward.2} parent=11 // pred_fallthru
          _
        // Predicated region
        $region21: #{encoder_forward.2} parent=11 // pred_check
          %p288 = pneg %p157
        $region22: #{encoder_forward.2} parent=11 // pred_check_branch
          %290 = sbr.rel (%p288) target = $region24
        $region23: #{encoder_forward.2} parent=11 // pred_region
          _
        $region24: #{encoder_forward.2} parent=11 // pred_fallthru
          _
        // Predicated region
        $region25: #{encoder_forward.2} parent=11 // pred_check
          %p291 = pneg %p178
        $region26: #{encoder_forward.2} parent=11 // pred_check_branch
          %293 = sbr.rel (%p291) target = $region28
        $region27: #{encoder_forward.2} parent=11 // pred_region
          _
        $region28: #{encoder_forward.2} parent=11 // pred_fallthru
          _
        // Predicated region
        $region29: #{encoder_forward.2} parent=11 // pred_check
          %p294 = pneg %p199
        $region30: #{encoder_forward.2} parent=11 // pred_check_branch
          %296 = sbr.rel (%p294) target = $region32
        $region31: #{encoder_forward.2} parent=11 // pred_region
          _
        $region32: #{encoder_forward.2} parent=11 // pred_fallthru
          _
        // Predicated region
        $region33: #{encoder_forward.2} parent=11 // pred_check
          %p297 = pneg %p220
        $region34: #{encoder_forward.2} parent=11 // pred_check_branch
          %299 = sbr.rel (%p297) target = $region36
        $region35: #{encoder_forward.2} parent=11 // pred_region
          _
        $region36: #{encoder_forward.2} parent=11 // pred_fallthru
          _
        // Predicated region
        $region37: #{encoder_forward.2} parent=11 // pred_check
          %p300 = pneg %p241
        $region38: #{encoder_forward.2} parent=11 // pred_check_branch
          %302 = sbr.rel (%p300) target = $region40
        $region39: #{encoder_forward.2} parent=11 // pred_region
          _
        $region40: #{encoder_forward.2} parent=11 // pred_fallthru
          _
      $region12: #{encoder_forward.2} parent=5 // pred_fallthru
        _
      %p303 = scmp.lt.s32.totalorder %s16, 2
      // Predicated region
      $region41: #{encoder_forward.2} parent=5 // pred_check
        %p304 = pneg %p303
      $region42: #{encoder_forward.2} parent=5 // pred_check_branch
        %306 = sbr.rel (%p304) target = $region44
      $region43: #{encoder_forward.2} parent=5 // pred_region
        // Predicated region
        $region45: #{encoder_forward.2} parent=43 // pred_check
          %p307 = pneg %p36
        $region46: #{encoder_forward.2} parent=43 // pred_check_branch
          %309 = sbr.rel (%p307) target = $region48
        $region47: #{encoder_forward.2} parent=43 // pred_region
          %p310 = scmp.lt.s32.totalorder %s16, 1
          %s311 = scalar_select %p310, %s16, 1
          %s312 = smul.addr %s311, 8
          %s313 = scalar_lea.vmem %s0, %s312
        $region48: #{encoder_forward.2} parent=43 // pred_fallthru
          _
        // Predicated region
        $region49: #{encoder_forward.2} parent=43 // pred_check
          %p314 = pneg %p62
        $region50: #{encoder_forward.2} parent=43 // pred_check_branch
          %316 = sbr.rel (%p314) target = $region52
        $region51: #{encoder_forward.2} parent=43 // pred_region
          %p317 = scmp.lt.s32.totalorder %s16, 1
          %s318 = scalar_select %p317, %s16, 1
          %s319 = smul.addr %s318, 2
          %s320 = smul.addr %s319, 8
          %s321 = scalar_lea.vmem %s1, %s320
        $region52: #{encoder_forward.2} parent=43 // pred_fallthru
          _
        // Predicated region
        $region53: #{encoder_forward.2} parent=43 // pred_check
          %p322 = pneg %p88
        $region54: #{encoder_forward.2} parent=43 // pred_check_branch
          %324 = sbr.rel (%p322) target = $region56
        $region55: #{encoder_forward.2} parent=43 // pred_region
          %s325 = sand.u32 %s78, 1
          %s326 = sand.u32 %s78, 1
          %s327 = smul.addr %s326, 16
          %s328 = scalar_lea.vmem [#allocation2], %s327
          %s329 = smul.addr %s16, 4
          %s330 = scalar_lea.vmem %s2, %s329
          // Predicated region
          $region57: #{encoder_forward.2} parent=55 // pred_check
            _
          $region58: #{encoder_forward.2} parent=55 // pred_check_branch
            %332 = sbr.rel (0) target = $region60
          $region59: #{encoder_forward.2} parent=55 // pred_region
            // Predicated region
            $region61: #{encoder_forward.2} parent=59 // pred_check
              _
            $region62: #{encoder_forward.2} parent=59 // pred_check_branch
              %334 = sbr.rel target = $region64
            $region63: #{encoder_forward.2} parent=59 // pred_region
              // Predicated region
              $region76: #{encoder_forward.2} parent=63 // pred_check
                _
              $region77: #{encoder_forward.2} parent=63 // pred_check_branch
                %356 = sbr.rel (0) target = $region79
              $region78: #{encoder_forward.2} parent=63 // pred_region
                loop: start=0, step=1, limit=1
                $region80: #{encoder_forward.2} parent=78 // loop_pre_header
                  _
                $region81: #{encoder_forward.2} parent=78 // loop_header
                  %s358 = sphi 0, %s362
                  %p359 = scmp.ge.s32.totalorder %s358, 1
                  %s363 = sphi %s330, %s330
                  %s364 = sphi %s328, %s328
                $region82: #{encoder_forward.2} parent=78 // loop_header_branch
                  %361 = sbr.rel (%p359) target = $region86
                $region83: #{encoder_forward.2} parent=78 // loop_body
                  _
                $region84: #{encoder_forward.2} parent=78 // loop_footer
                  %s362 = sadd.s32 1, %s358
                $region85: #{encoder_forward.2} parent=78 // loop_footer_branch
                  %357 = sbr.rel target = $region81
                $region86: #{encoder_forward.2} parent=78 // loop_exit
                  _
                %s366 = ssub.s32 16, 1
                loop: start=0, step=1, limit=1
                $region87: #{encoder_forward.2} parent=78 // loop_pre_header
                  _
                $region88: #{encoder_forward.2} parent=78 // loop_header
                  %s368 = sphi 0, %s372
                  %p369 = scmp.ge.s32.totalorder %s368, 1
                  %s373 = sphi %s330, %s330
                  %s374 = sphi %s328, %s328
                $region89: #{encoder_forward.2} parent=78 // loop_header_branch
                  %371 = sbr.rel (%p369) target = $region93
                $region90: #{encoder_forward.2} parent=78 // loop_body
                  %v375 = vld [vmem:[%s373] sm:%s366]
                  %376 = vst [vmem:[%s374] sm:%s366] %v375
                  %v377 = vld [vmem:[%s373 + $0x8] sm:%s366]
                  %378 = vst [vmem:[%s374 + $0x4] sm:%s366] %v377
                  %v379 = vld [vmem:[%s373 + $0x10] sm:%s366]
                  %380 = vst [vmem:[%s374 + $0x8] sm:%s366] %v379
                  %v381 = vld [vmem:[%s373 + $0x18] sm:%s366]
                  %382 = vst [vmem:[%s374 + $0xc] sm:%s366] %v381
                $region91: #{encoder_forward.2} parent=78 // loop_footer
                  %s372 = sadd.s32 1, %s368
                $region92: #{encoder_forward.2} parent=78 // loop_footer_branch
                  %367 = sbr.rel target = $region88
                $region93: #{encoder_forward.2} parent=78 // loop_exit
                  _
              $region79: #{encoder_forward.2} parent=63 // pred_fallthru
                _
            $region64: #{encoder_forward.2} parent=59 // pred_fallthru
              _
            // Predicated region
            $region65: #{encoder_forward.2} parent=59 // pred_check
              _
            $region66: #{encoder_forward.2} parent=59 // pred_check_branch
              %336 = sbr.rel (0) target = $region68
            $region67: #{encoder_forward.2} parent=59 // pred_region
              %s338 = ssub.s32 16, 1
              loop: start=0, step=1, limit=1
              $region69: #{encoder_forward.2} parent=67 // loop_pre_header
                _
              $region70: #{encoder_forward.2} parent=67 // loop_header
                %s340 = sphi 0, %s344
                %p341 = scmp.ge.s32.totalorder %s340, 1
                %s345 = sphi %s330, %s330
                %s346 = sphi %s328, %s328
              $region71: #{encoder_forward.2} parent=67 // loop_header_branch
                %343 = sbr.rel (%p341) target = $region75
              $region72: #{encoder_forward.2} parent=67 // loop_body
                %v347 = vld [vmem:[%s345] sm:%s338]
                %348 = vst [vmem:[%s346] sm:%s338] %v347
                %v349 = vld [vmem:[%s345 + $0x8] sm:%s338]
                %350 = vst [vmem:[%s346 + $0x4] sm:%s338] %v349
                %v351 = vld [vmem:[%s345 + $0x10] sm:%s338]
                %352 = vst [vmem:[%s346 + $0x8] sm:%s338] %v351
                %v353 = vld [vmem:[%s345 + $0x18] sm:%s338]
                %354 = vst [vmem:[%s346 + $0xc] sm:%s338] %v353
              $region73: #{encoder_forward.2} parent=67 // loop_footer
                %s344 = sadd.s32 1, %s340
              $region74: #{encoder_forward.2} parent=67 // loop_footer_branch
                %339 = sbr.rel target = $region70
              $region75: #{encoder_forward.2} parent=67 // loop_exit
                _
            $region68: #{encoder_forward.2} parent=59 // pred_fallthru
              _
          $region60: #{encoder_forward.2} parent=55 // pred_fallthru
            _
          %383 = vnop
        $region56: #{encoder_forward.2} parent=43 // pred_fallthru
          _
      $region44: #{encoder_forward.2} parent=5 // pred_fallthru
        _
      %p384 = scmp.le.s32.totalorder 1, %s16
      %p385 = scmp.lt.s32.totalorder %s16, 3
      %p386 = pnand %p384, %p385
      %p387 = pneg %p386
      // Predicated region
      $region94: #{encoder_forward.2} parent=5 // pred_check
        _
      $region95: #{encoder_forward.2} parent=5 // pred_check_branch
        %389 = sbr.rel (%p386) target = $region97
      $region96: #{encoder_forward.2} parent=5 // pred_region
        %s390 = ssub.s32 %s16, 1
        %s391 = sand.u32 %s81, 1
        %s392 = sand.u32 %s81, 1
        %s393 = smul.addr %s392, 16
        %s394 = scalar_lea.vmem [#allocation2], %s393
        // Predicated region
        $region98: #{encoder_forward.2} parent=96 // pred_check
          %p395 = pneg %p94
        $region99: #{encoder_forward.2} parent=96 // pred_check_branch
          %397 = sbr.rel (%p395) target = $region101
        $region100: #{encoder_forward.2} parent=96 // pred_region
          _
        $region101: #{encoder_forward.2} parent=96 // pred_fallthru
          _
        %p398 = scmp.lt.s32.totalorder %s21, 1
        %s399 = scalar_select %p398, %s21, 1
        %s400 = smul.addr %s399, 8
        %s401 = scalar_lea.vmem %s0, %s400
        %p402 = pneg %p42
        %p403 = pneg %p39
        %p404 = scmp.lt.s32.totalorder %s21, 1
        %s405 = scalar_select %p404, %s21, 1
        %s406 = smul.addr %s405, 2
        %s407 = smul.addr %s406, 8
        %s408 = scalar_lea.vmem %s1, %s407
        %p409 = pneg %p68
        %p410 = pneg %p65
        %s411 = sand.u32 %s81, 1
        %s412 = sand.u32 %s81, 1
        %s413 = smul.addr %s412, 16
        %s414 = scalar_lea.vmem [#allocation2], %s413
        %p415 = pneg %p94
        %p416 = pneg %p91
        %p417 = pneg %p115
        %p418 = pneg %p112
        %p419 = pneg %p136
        %p420 = pneg %p133
        %p421 = pneg %p157
        %p422 = pneg %p154
        %p423 = pneg %p178
        %p424 = pneg %p175
        %p425 = pneg %p199
        %p426 = pneg %p196
        %p427 = pneg %p220
        %p428 = pneg %p217
        %p429 = pneg %p241
        %p430 = pneg %p238
        %p431 = pneg %p267
        %p432 = pneg %p264
        %p433 = scmp.lt.s32.totalorder %s21, 1
        %s434 = scalar_select %p433, %s21, 1
        %s435 = smul.addr %s434, 8
        %s436 = scalar_lea.vmem %s10, %s435
        %p437 = scmp.lt.s32.totalorder %s21, 1
        %s438 = scalar_select %p437, %s21, 1
        %s439 = smul.addr %s438, 8
        %s440 = scalar_lea.vmem %s0, %s439
        %p441 = scmp.lt.s32.totalorder %s21, 1
        %s442 = scalar_select %p441, %s21, 1
        %s443 = smul.addr %s442, 2
        %s444 = smul.addr %s443, 8
        %s445 = scalar_lea.vmem %s1, %s444
        %p446 = scmp.lt.s32.totalorder %s21, 1
        %s447 = scalar_select %p446, %s21, 1
        %s448 = smul.addr %s447, 8
        %s449 = scalar_lea.vmem %s10, %s448
        %v451 = vld [vmem:[%s440] sm:$0xff]
        %v452 = vld [vmem:[%s445] sm:$0xff]
        %v453 = vld [vmem:[%s445 + $0x8] sm:$0xff]
        %v454 = vpack.c.bf16 %v451, %v451
        %v455 = vpack.c.bf16 %v453, %v452
        %v456 = vld [vmem:[%s3] sm:$0xf]
        %v457 = vld [vmem:[%s3 + $0x4] sm:$0xf]
        %v458 = vld [vmem:[%s3 + $0x8] sm:$0xf]
        %v459 = vld [vmem:[%s3 + $0xc] sm:$0xf]
        %v460 = vld [vmem:[%s4] sm:$0x1]
        %v462 = vlaneseq
        %v463 = vshrl.u32 %v462, 7
        %v464 = vsub.s32 0, %v463
        %v465 = vrot.slane %v460, %v464
        %v471 = vunpack.c.l.b16 %v456
        %v472 = vunpack.c.l.b16 %v457
        %v473 = vunpack.c.l.b16 %v458
        %v474 = vunpack.c.l.b16 %v459
        %v475 = vpack.c.b16 %v472, %v471
        %v476 = vpack.c.b16 %v474, %v473
        %vm479 = vcmask 261120
        %v481 = vsel %vm479, %v454, 0
        %483 = vmatprep.subr.bf16.mxu0 0
        %484 = vmatpush1.bf16.msra.mxu0 0
        %485 = vmatprep.subr.bf16.mxu0 0
        %486 = vmatpush1.bf16.msra.mxu0 0
        %487 = vmatprep.subr.bf16.mxu0 0
        %488 = vmatpush1.bf16.msra.mxu0 0
        %489 = vmatprep.subr.bf16.mxu0 0
        %490 = vmatpush1.bf16.msra.mxu0 0
        %491 = vmatprep.subr.bf16.mxu0 0
        %492 = vmatpush1.bf16.msra.mxu0 0
        %493 = vmatprep.subr.bf16.mxu0 0
        %494 = vmatpush1.bf16.msra.mxu0 0
        %495 = vmatprep.subr.bf16.mxu0 0
        %496 = vmatpush1.bf16.msra.mxu0 %v476
        %497 = vmatprep.subr.bf16.mxu0 0
        %498 = vmatpush1.bf16.msra.mxu0 %v475
        %499 = vmatprep.subr.bf16.mxu0 0
        %500 = vmatpush2.bf16.msra.mxu0 0
        %501 = vmatprep.subr.bf16.mxu0 0
        %502 = vmatpush2.bf16.msra.mxu0 0
        %503 = vmatprep.subr.bf16.mxu0 0
        %504 = vmatpush2.bf16.msra.mxu0 0
        %505 = vmatprep.subr.bf16.mxu0 0
        %506 = vmatpush2.bf16.msra.mxu0 0
        %507 = vmatprep.subr.bf16.mxu0 0
        %508 = vmatpush2.bf16.msra.mxu0 0
        %509 = vmatprep.subr.bf16.mxu0 0
        %510 = vmatpush2.bf16.msra.mxu0 0
        %511 = vmatprep.subr.bf16.mxu0 0
        %512 = vmatpush2.bf16.msra.mxu0 0
        %513 = vmatprep.subr.bf16.mxu0 0
        %514 = vmatpush2.bf16.msra.mxu0 0
        %515 = vmatprep.mubr.bf16.mxu0 0
        %516 = vmatmul.mubr.bf16.gmra.mxu0 %v481
        %v517 = vpop.f32.mrf.mxu0
        %v518 = vadd.f32 %v465, %v517
        %v519 = vpop.f32.mrf.mxu0
        %v520 = vpop.f32.mrf.mxu0
        %v521 = vpop.f32.mrf.mxu0
        %522 = vdwg.mxu0
        %v523 = vpack.c.bf16 %v518, %v518
        %s524 = scalar_lea.vmem %s3, 64
        %v525 = vld [vmem:[%s524] sm:$0xf]
        %v526 = vld [vmem:[%s524 + $0x4] sm:$0xf]
        %v527 = vld [vmem:[%s524 + $0x8] sm:$0xf]
        %v528 = vld [vmem:[%s524 + $0xc] sm:$0xf]
        %s529 = scalar_lea.vmem %s4, 4
        %v530 = vld [vmem:[%s529] sm:$0x1]
        %v532 = vlaneseq
        %v533 = vshrl.u32 %v532, 7
        %v534 = vsub.s32 0, %v533
        %v535 = vrot.slane %v530, %v534
        %v541 = vunpack.c.l.b16 %v525
        %v542 = vunpack.c.l.b16 %v526
        %v543 = vunpack.c.l.b16 %v527
        %v544 = vunpack.c.l.b16 %v528
        %v545 = vpack.c.b16 %v542, %v541
        %v546 = vpack.c.b16 %v544, %v543
        %v550 = vsel %vm479, %v455, 0
        %552 = vmatprep.subr.bf16.mxu0 0
        %553 = vmatpush1.bf16.msra.mxu0 0
        %554 = vmatprep.subr.bf16.mxu0 0
        %555 = vmatpush1.bf16.msra.mxu0 0
        %556 = vmatprep.subr.bf16.mxu0 0
        %557 = vmatpush1.bf16.msra.mxu0 0
        %558 = vmatprep.subr.bf16.mxu0 0
        %559 = vmatpush1.bf16.msra.mxu0 0
        %560 = vmatprep.subr.bf16.mxu0 0
        %561 = vmatpush1.bf16.msra.mxu0 0
        %562 = vmatprep.subr.bf16.mxu0 0
        %563 = vmatpush1.bf16.msra.mxu0 0
        %564 = vmatprep.subr.bf16.mxu0 0
        %565 = vmatpush1.bf16.msra.mxu0 %v546
        %566 = vmatprep.subr.bf16.mxu0 0
        %567 = vmatpush1.bf16.msra.mxu0 %v545
        %568 = vmatprep.subr.bf16.mxu0 0
        %569 = vmatpush2.bf16.msra.mxu0 0
        %570 = vmatprep.subr.bf16.mxu0 0
        %571 = vmatpush2.bf16.msra.mxu0 0
        %572 = vmatprep.subr.bf16.mxu0 0
        %573 = vmatpush2.bf16.msra.mxu0 0
        %574 = vmatprep.subr.bf16.mxu0 0
        %575 = vmatpush2.bf16.msra.mxu0 0
        %576 = vmatprep.subr.bf16.mxu0 0
        %577 = vmatpush2.bf16.msra.mxu0 0
        %578 = vmatprep.subr.bf16.mxu0 0
        %579 = vmatpush2.bf16.msra.mxu0 0
        %580 = vmatprep.subr.bf16.mxu0 0
        %581 = vmatpush2.bf16.msra.mxu0 0
        %582 = vmatprep.subr.bf16.mxu0 0
        %583 = vmatpush2.bf16.msra.mxu0 0
        %584 = vmatprep.mubr.bf16.mxu0 0
        %585 = vmatmul.mubr.bf16.gmra.mxu0 %v550
        %v586 = vpop.f32.mrf.mxu0
        %v587 = vadd.f32 %v535, %v586
        %v588 = vpop.f32.mrf.mxu0
        %v589 = vpop.f32.mrf.mxu0
        %v590 = vadd.f32 %v535, %v589
        %v591 = vpop.f32.mrf.mxu0
        %592 = vmatprep.mubr.bf16.mxu0 0
        %593 = vmatmul.mubr.bf16.gmra.mxu0 %v481
        %v594 = vpop.f32.mrf.mxu0
        %v595 = vadd.f32 %v535, %v594
        %v596 = vpop.f32.mrf.mxu0
        %v597 = vpop.f32.mrf.mxu0
        %v598 = vpop.f32.mrf.mxu0
        %599 = vdwg.mxu0
        %v600 = vpack.c.bf16 %v590, %v587
        %v601 = vpack.c.bf16 %v595, %v595
        %s602 = scalar_lea.vmem %s3, 128
        %v603 = vld [vmem:[%s602] sm:$0xf]
        %v604 = vld [vmem:[%s602 + $0x4] sm:$0xf]
        %v605 = vld [vmem:[%s602 + $0x8] sm:$0xf]
        %v606 = vld [vmem:[%s602 + $0xc] sm:$0xf]
        %s607 = scalar_lea.vmem %s4, 8
        %v608 = vld [vmem:[%s607] sm:$0x1]
        %v610 = vlaneseq
        %v611 = vshrl.u32 %v610, 7
        %v612 = vsub.s32 0, %v611
        %v613 = vrot.slane %v608, %v612
        %v619 = vunpack.c.l.b16 %v603
        %v620 = vunpack.c.l.b16 %v604
        %v621 = vunpack.c.l.b16 %v605
        %v622 = vunpack.c.l.b16 %v606
        %v623 = vpack.c.b16 %v620, %v619
        %v624 = vpack.c.b16 %v622, %v621
        %627 = vmatprep.subr.bf16.mxu0 0
        %628 = vmatpush1.bf16.msra.mxu0 0
        %629 = vmatprep.subr.bf16.mxu0 0
        %630 = vmatpush1.bf16.msra.mxu0 0
        %631 = vmatprep.subr.bf16.mxu0 0
        %632 = vmatpush1.bf16.msra.mxu0 0
        %633 = vmatprep.subr.bf16.mxu0 0
        %634 = vmatpush1.bf16.msra.mxu0 0
        %635 = vmatprep.subr.bf16.mxu0 0
        %636 = vmatpush1.bf16.msra.mxu0 0
        %637 = vmatprep.subr.bf16.mxu0 0
        %638 = vmatpush1.bf16.msra.mxu0 0
        %639 = vmatprep.subr.bf16.mxu0 0
        %640 = vmatpush1.bf16.msra.mxu0 %v624
        %641 = vmatprep.subr.bf16.mxu0 0
        %642 = vmatpush1.bf16.msra.mxu0 %v623
        %643 = vmatprep.subr.bf16.mxu0 0
        %644 = vmatpush2.bf16.msra.mxu0 0
        %645 = vmatprep.subr.bf16.mxu0 0
        %646 = vmatpush2.bf16.msra.mxu0 0
        %647 = vmatprep.subr.bf16.mxu0 0
        %648 = vmatpush2.bf16.msra.mxu0 0
        %649 = vmatprep.subr.bf16.mxu0 0
        %650 = vmatpush2.bf16.msra.mxu0 0
        %651 = vmatprep.subr.bf16.mxu0 0
        %652 = vmatpush2.bf16.msra.mxu0 0
        %653 = vmatprep.subr.bf16.mxu0 0
        %654 = vmatpush2.bf16.msra.mxu0 0
        %655 = vmatprep.subr.bf16.mxu0 0
        %656 = vmatpush2.bf16.msra.mxu0 0
        %657 = vmatprep.subr.bf16.mxu0 0
        %658 = vmatpush2.bf16.msra.mxu0 0
        %659 = vmatprep.mubr.bf16.mxu0 0
        %660 = vmatmul.mubr.bf16.gmra.mxu0 %v550
        %v661 = vpop.f32.mrf.mxu0
        %v662 = vadd.f32 %v613, %v661
        %v663 = vpop.f32.mrf.mxu0
        %v664 = vpop.f32.mrf.mxu0
        %v665 = vadd.f32 %v613, %v664
        %v666 = vpop.f32.mrf.mxu0
        %667 = vmatprep.mubr.bf16.mxu0 0
        %668 = vmatmul.mubr.bf16.gmra.mxu0 %v481
        %v669 = vpop.f32.mrf.mxu0
        %v670 = vadd.f32 %v613, %v669
        %v671 = vpop.f32.mrf.mxu0
        %v672 = vpop.f32.mrf.mxu0
        %v673 = vpop.f32.mrf.mxu0
        %674 = vdwg.mxu0
        %v675 = vpack.c.bf16 %v665, %v662
        %v676 = vpack.c.bf16 %v670, %v670
        %vm677 = vcmask 64512
        %v679 = vsel %vm677, %v523, 0
        %v682 = vsel %vm677, %v600, 0
        %v685 = vsel %vm677, %v601, 0
        %687 = vmatprep.subr.bf16.mxu0 0
        %688 = vmatpush1.bf16.xpose.msra.mxu0 0
        %689 = vmatprep.subr.bf16.mxu0 0
        %690 = vmatpush1.bf16.xpose.msra.mxu0 0
        %691 = vmatprep.subr.bf16.mxu0 0
        %692 = vmatpush1.bf16.xpose.msra.mxu0 0
        %693 = vmatprep.subr.bf16.mxu0 0
        %694 = vmatpush1.bf16.xpose.msra.mxu0 0
        %695 = vmatprep.subr.bf16.mxu0 0
        %696 = vmatpush1.bf16.xpose.msra.mxu0 0
        %697 = vmatprep.subr.bf16.mxu0 0
        %698 = vmatpush1.bf16.xpose.msra.mxu0 0
        %699 = vmatprep.subr.bf16.mxu0 0
        %700 = vmatpush1.bf16.xpose.msra.mxu0 %v685
        %701 = vmatprep.subr.bf16.mxu0 0
        %702 = vmatpush1.bf16.xpose.msra.mxu0 %v682
        %703 = vmatprep.subr.bf16.mxu0 0
        %704 = vmatpush2.bf16.xpose.msra.mxu0 0
        %705 = vmatprep.subr.bf16.mxu0 0
        %706 = vmatpush2.bf16.xpose.msra.mxu0 0
        %707 = vmatprep.subr.bf16.mxu0 0
        %708 = vmatpush2.bf16.xpose.msra.mxu0 0
        %709 = vmatprep.subr.bf16.mxu0 0
        %710 = vmatpush2.bf16.xpose.msra.mxu0 0
        %711 = vmatprep.subr.bf16.mxu0 0
        %712 = vmatpush2.bf16.xpose.msra.mxu0 0
        %713 = vmatprep.subr.bf16.mxu0 0
        %714 = vmatpush2.bf16.xpose.msra.mxu0 0
        %715 = vmatprep.subr.bf16.mxu0 0
        %716 = vmatpush2.bf16.xpose.msra.mxu0 0
        %717 = vmatprep.subr.bf16.mxu0 0
        %718 = vmatpush2.bf16.xpose.msra.mxu0 0
        %719 = vmatprep.mubr.bf16.mxu0 0
        %720 = vmatmul.mubr.bf16.gmra.mxu0 %v679
        %v721 = vpop.f32.mrf.mxu0
        %v722 = vadd.f32 0.0, %v721
        %v723 = vpop.f32.mrf.mxu0
        %v724 = vpop.f32.mrf.mxu0
        %v725 = vpop.f32.mrf.mxu0
        %726 = vdwg.mxu0
        %v727 = vmul.f32 %v722, 0.35355338
        %v728 = vld [vmem:[%s394] sm:$0xf]
        %v729 = vunpack.c.l.bf16 %v728
        %v730 = vadd.f32 %v727, %v729
        %vm731 = vcmask 195584
        %v732 = vsel %vm731, %v730, -inf
        %733 = vmax.xlane.f32.xlu0 %v732
        %v734 = vpop.xlane.xlu0 %733
        %v735 = vsub.f32 %v730, %v734
        %v736 = vmul.f32 %v735, 1.442695
        %v737 = vpow.pop %v736
        %v738 = vsel %vm731, %v737, 0.0
        %739 = vadd.xlane.f32.xlu0 %v738
        %v740 = vpop.xlane.xlu0 %739
        %v741 = vrcp.pop %v740
        %v742 = vmul.f32 %v737, %v741
        %v743 = vpack.c.bf16 %v742, %v742
        %v745 = vsel %vm731, %v743, 0
        %vm747 = vcmask 1043456
        %v749 = vsel %vm747, %v676, 0
        %751 = vmatprep.subr.bf16.mxu0 0
        %752 = vmatpush1.bf16.msra.mxu0 0
        %753 = vmatprep.subr.bf16.mxu0 0
        %754 = vmatpush1.bf16.msra.mxu0 0
        %755 = vmatprep.subr.bf16.mxu0 0
        %756 = vmatpush1.bf16.msra.mxu0 0
        %757 = vmatprep.subr.bf16.mxu0 0
        %758 = vmatpush1.bf16.msra.mxu0 0
        %759 = vmatprep.subr.bf16.mxu0 0
        %760 = vmatpush1.bf16.msra.mxu0 0
        %761 = vmatprep.subr.bf16.mxu0 0
        %762 = vmatpush1.bf16.msra.mxu0 0
        %763 = vmatprep.subr.bf16.mxu0 0
        %764 = vmatpush1.bf16.msra.mxu0 %v749
        %765 = vmatprep.subr.bf16.mxu0 0
        %766 = vmatpush1.bf16.msra.mxu0 %v675
        %767 = vmatprep.subr.bf16.mxu0 0
        %768 = vmatpush2.bf16.msra.mxu0 0
        %769 = vmatprep.subr.bf16.mxu0 0
        %770 = vmatpush2.bf16.msra.mxu0 0
        %771 = vmatprep.subr.bf16.mxu0 0
        %772 = vmatpush2.bf16.msra.mxu0 0
        %773 = vmatprep.subr.bf16.mxu0 0
        %774 = vmatpush2.bf16.msra.mxu0 0
        %775 = vmatprep.subr.bf16.mxu0 0
        %776 = vmatpush2.bf16.msra.mxu0 0
        %777 = vmatprep.subr.bf16.mxu0 0
        %778 = vmatpush2.bf16.msra.mxu0 0
        %779 = vmatprep.subr.bf16.mxu0 0
        %780 = vmatpush2.bf16.msra.mxu0 0
        %781 = vmatprep.subr.bf16.mxu0 0
        %782 = vmatpush2.bf16.msra.mxu0 0
        %783 = vmatprep.mubr.bf16.mxu0 0
        %784 = vmatmul.mubr.bf16.gmra.mxu0 %v745
        %v785 = vpop.f32.mrf.mxu0
        %v786 = vadd.f32 0.0, %v785
        %v787 = vpop.f32.mrf.mxu0
        %v788 = vpop.f32.mrf.mxu0
        %v789 = vpop.f32.mrf.mxu0
        %790 = vdwg.mxu0
        %v791 = vpack.c.bf16 %v786, %v786
        %v792 = vld [vmem:[%s5] sm:$0xf]
        %s793 = scalar_lea.vmem %s3, 16
        %v794 = vld [vmem:[%s793] sm:$0xf]
        %v795 = vld [vmem:[%s793 + $0x4] sm:$0xf]
        %v796 = vld [vmem:[%s793 + $0x8] sm:$0xf]
        %v797 = vld [vmem:[%s793 + $0xc] sm:$0xf]
        %s798 = scalar_lea.vmem %s4, 1
        %v799 = vld [vmem:[%s798] sm:$0x1]
        %v801 = vlaneseq
        %v802 = vshrl.u32 %v801, 7
        %v803 = vsub.s32 0, %v802
        %v804 = vrot.slane %v799, %v803
        %v810 = vunpack.c.l.b16 %v794
        %v811 = vunpack.c.l.b16 %v795
        %v812 = vunpack.c.l.b16 %v796
        %v813 = vunpack.c.l.b16 %v797
        %v814 = vpack.c.b16 %v811, %v810
        %v815 = vpack.c.b16 %v813, %v812
        %818 = vmatprep.subr.bf16.mxu0 0
        %819 = vmatpush1.bf16.msra.mxu0 0
        %820 = vmatprep.subr.bf16.mxu0 0
        %821 = vmatpush1.bf16.msra.mxu0 0
        %822 = vmatprep.subr.bf16.mxu0 0
        %823 = vmatpush1.bf16.msra.mxu0 0
        %824 = vmatprep.subr.bf16.mxu0 0
        %825 = vmatpush1.bf16.msra.mxu0 0
        %826 = vmatprep.subr.bf16.mxu0 0
        %827 = vmatpush1.bf16.msra.mxu0 0
        %828 = vmatprep.subr.bf16.mxu0 0
        %829 = vmatpush1.bf16.msra.mxu0 0
        %830 = vmatprep.subr.bf16.mxu0 0
        %831 = vmatpush1.bf16.msra.mxu0 %v815
        %832 = vmatprep.subr.bf16.mxu0 0
        %833 = vmatpush1.bf16.msra.mxu0 %v814
        %834 = vmatprep.subr.bf16.mxu0 0
        %835 = vmatpush2.bf16.msra.mxu0 0
        %836 = vmatprep.subr.bf16.mxu0 0
        %837 = vmatpush2.bf16.msra.mxu0 0
        %838 = vmatprep.subr.bf16.mxu0 0
        %839 = vmatpush2.bf16.msra.mxu0 0
        %840 = vmatprep.subr.bf16.mxu0 0
        %841 = vmatpush2.bf16.msra.mxu0 0
        %842 = vmatprep.subr.bf16.mxu0 0
        %843 = vmatpush2.bf16.msra.mxu0 0
        %844 = vmatprep.subr.bf16.mxu0 0
        %845 = vmatpush2.bf16.msra.mxu0 0
        %846 = vmatprep.subr.bf16.mxu0 0
        %847 = vmatpush2.bf16.msra.mxu0 0
        %848 = vmatprep.subr.bf16.mxu0 0
        %849 = vmatpush2.bf16.msra.mxu0 0
        %850 = vmatprep.mubr.bf16.mxu0 0
        %851 = vmatmul.mubr.bf16.gmra.mxu0 %v481
        %v852 = vpop.f32.mrf.mxu0
        %v853 = vadd.f32 %v804, %v852
        %v854 = vpop.f32.mrf.mxu0
        %v855 = vpop.f32.mrf.mxu0
        %v856 = vpop.f32.mrf.mxu0
        %857 = vdwg.mxu0
        %v858 = vpack.c.bf16 %v853, %v853
        %s859 = scalar_lea.vmem %s3, 80
        %v860 = vld [vmem:[%s859] sm:$0xf]
        %v861 = vld [vmem:[%s859 + $0x4] sm:$0xf]
        %v862 = vld [vmem:[%s859 + $0x8] sm:$0xf]
        %v863 = vld [vmem:[%s859 + $0xc] sm:$0xf]
        %s864 = scalar_lea.vmem %s4, 5
        %v865 = vld [vmem:[%s864] sm:$0x1]
        %v867 = vlaneseq
        %v868 = vshrl.u32 %v867, 7
        %v869 = vsub.s32 0, %v868
        %v870 = vrot.slane %v865, %v869
        %v876 = vunpack.c.l.b16 %v860
        %v877 = vunpack.c.l.b16 %v861
        %v878 = vunpack.c.l.b16 %v862
        %v879 = vunpack.c.l.b16 %v863
        %v880 = vpack.c.b16 %v877, %v876
        %v881 = vpack.c.b16 %v879, %v878
        %884 = vmatprep.subr.bf16.mxu0 0
        %885 = vmatpush1.bf16.msra.mxu0 0
        %886 = vmatprep.subr.bf16.mxu0 0
        %887 = vmatpush1.bf16.msra.mxu0 0
        %888 = vmatprep.subr.bf16.mxu0 0
        %889 = vmatpush1.bf16.msra.mxu0 0
        %890 = vmatprep.subr.bf16.mxu0 0
        %891 = vmatpush1.bf16.msra.mxu0 0
        %892 = vmatprep.subr.bf16.mxu0 0
        %893 = vmatpush1.bf16.msra.mxu0 0
        %894 = vmatprep.subr.bf16.mxu0 0
        %895 = vmatpush1.bf16.msra.mxu0 0
        %896 = vmatprep.subr.bf16.mxu0 0
        %897 = vmatpush1.bf16.msra.mxu0 %v881
        %898 = vmatprep.subr.bf16.mxu0 0
        %899 = vmatpush1.bf16.msra.mxu0 %v880
        %900 = vmatprep.subr.bf16.mxu0 0
        %901 = vmatpush2.bf16.msra.mxu0 0
        %902 = vmatprep.subr.bf16.mxu0 0
        %903 = vmatpush2.bf16.msra.mxu0 0
        %904 = vmatprep.subr.bf16.mxu0 0
        %905 = vmatpush2.bf16.msra.mxu0 0
        %906 = vmatprep.subr.bf16.mxu0 0
        %907 = vmatpush2.bf16.msra.mxu0 0
        %908 = vmatprep.subr.bf16.mxu0 0
        %909 = vmatpush2.bf16.msra.mxu0 0
        %910 = vmatprep.subr.bf16.mxu0 0
        %911 = vmatpush2.bf16.msra.mxu0 0
        %912 = vmatprep.subr.bf16.mxu0 0
        %913 = vmatpush2.bf16.msra.mxu0 0
        %914 = vmatprep.subr.bf16.mxu0 0
        %915 = vmatpush2.bf16.msra.mxu0 0
        %916 = vmatprep.mubr.bf16.mxu0 0
        %917 = vmatmul.mubr.bf16.gmra.mxu0 %v550
        %v918 = vpop.f32.mrf.mxu0
        %v919 = vadd.f32 %v870, %v918
        %v920 = vpop.f32.mrf.mxu0
        %v921 = vpop.f32.mrf.mxu0
        %v922 = vadd.f32 %v870, %v921
        %v923 = vpop.f32.mrf.mxu0
        %924 = vmatprep.mubr.bf16.mxu0 0
        %925 = vmatmul.mubr.bf16.gmra.mxu0 %v481
        %v926 = vpop.f32.mrf.mxu0
        %v927 = vadd.f32 %v870, %v926
        %v928 = vpop.f32.mrf.mxu0
        %v929 = vpop.f32.mrf.mxu0
        %v930 = vpop.f32.mrf.mxu0
        %931 = vdwg.mxu0
        %v932 = vpack.c.bf16 %v922, %v919
        %v933 = vpack.c.bf16 %v927, %v927
        %s934 = scalar_lea.vmem %s3, 144
        %v935 = vld [vmem:[%s934] sm:$0xf]
        %v936 = vld [vmem:[%s934 + $0x4] sm:$0xf]
        %v937 = vld [vmem:[%s934 + $0x8] sm:$0xf]
        %v938 = vld [vmem:[%s934 + $0xc] sm:$0xf]
        %s939 = scalar_lea.vmem %s4, 9
        %v940 = vld [vmem:[%s939] sm:$0x1]
        %v942 = vlaneseq
        %v943 = vshrl.u32 %v942, 7
        %v944 = vsub.s32 0, %v943
        %v945 = vrot.slane %v940, %v944
        %v951 = vunpack.c.l.b16 %v935
        %v952 = vunpack.c.l.b16 %v936
        %v953 = vunpack.c.l.b16 %v937
        %v954 = vunpack.c.l.b16 %v938
        %v955 = vpack.c.b16 %v952, %v951
        %v956 = vpack.c.b16 %v954, %v953
        %959 = vmatprep.subr.bf16.mxu0 0
        %960 = vmatpush1.bf16.msra.mxu0 0
        %961 = vmatprep.subr.bf16.mxu0 0
        %962 = vmatpush1.bf16.msra.mxu0 0
        %963 = vmatprep.subr.bf16.mxu0 0
        %964 = vmatpush1.bf16.msra.mxu0 0
        %965 = vmatprep.subr.bf16.mxu0 0
        %966 = vmatpush1.bf16.msra.mxu0 0
        %967 = vmatprep.subr.bf16.mxu0 0
        %968 = vmatpush1.bf16.msra.mxu0 0
        %969 = vmatprep.subr.bf16.mxu0 0
        %970 = vmatpush1.bf16.msra.mxu0 0
        %971 = vmatprep.subr.bf16.mxu0 0
        %972 = vmatpush1.bf16.msra.mxu0 %v956
        %973 = vmatprep.subr.bf16.mxu0 0
        %974 = vmatpush1.bf16.msra.mxu0 %v955
        %975 = vmatprep.subr.bf16.mxu0 0
        %976 = vmatpush2.bf16.msra.mxu0 0
        %977 = vmatprep.subr.bf16.mxu0 0
        %978 = vmatpush2.bf16.msra.mxu0 0
        %979 = vmatprep.subr.bf16.mxu0 0
        %980 = vmatpush2.bf16.msra.mxu0 0
        %981 = vmatprep.subr.bf16.mxu0 0
        %982 = vmatpush2.bf16.msra.mxu0 0
        %983 = vmatprep.subr.bf16.mxu0 0
        %984 = vmatpush2.bf16.msra.mxu0 0
        %985 = vmatprep.subr.bf16.mxu0 0
        %986 = vmatpush2.bf16.msra.mxu0 0
        %987 = vmatprep.subr.bf16.mxu0 0
        %988 = vmatpush2.bf16.msra.mxu0 0
        %989 = vmatprep.subr.bf16.mxu0 0
        %990 = vmatpush2.bf16.msra.mxu0 0
        %991 = vmatprep.mubr.bf16.mxu0 0
        %992 = vmatmul.mubr.bf16.gmra.mxu0 %v550
        %v993 = vpop.f32.mrf.mxu0
        %v994 = vadd.f32 %v945, %v993
        %v995 = vpop.f32.mrf.mxu0
        %v996 = vpop.f32.mrf.mxu0
        %v997 = vadd.f32 %v945, %v996
        %v998 = vpop.f32.mrf.mxu0
        %999 = vmatprep.mubr.bf16.mxu0 0
        %1000 = vmatmul.mubr.bf16.gmra.mxu0 %v481
        %v1001 = vpop.f32.mrf.mxu0
        %v1002 = vadd.f32 %v945, %v1001
        %v1003 = vpop.f32.mrf.mxu0
        %v1004 = vpop.f32.mrf.mxu0
        %v1005 = vpop.f32.mrf.mxu0
        %1006 = vdwg.mxu0
        %v1007 = vpack.c.bf16 %v997, %v994
        %v1008 = vpack.c.bf16 %v1002, %v1002
        %v1010 = vsel %vm677, %v858, 0
        %v1013 = vsel %vm677, %v932, 0
        %v1016 = vsel %vm677, %v933, 0
        %1018 = vmatprep.subr.bf16.mxu0 0
        %1019 = vmatpush1.bf16.xpose.msra.mxu0 0
        %1020 = vmatprep.subr.bf16.mxu0 0
        %1021 = vmatpush1.bf16.xpose.msra.mxu0 0
        %1022 = vmatprep.subr.bf16.mxu0 0
        %1023 = vmatpush1.bf16.xpose.msra.mxu0 0
        %1024 = vmatprep.subr.bf16.mxu0 0
        %1025 = vmatpush1.bf16.xpose.msra.mxu0 0
        %1026 = vmatprep.subr.bf16.mxu0 0
        %1027 = vmatpush1.bf16.xpose.msra.mxu0 0
        %1028 = vmatprep.subr.bf16.mxu0 0
        %1029 = vmatpush1.bf16.xpose.msra.mxu0 0
        %1030 = vmatprep.subr.bf16.mxu0 0
        %1031 = vmatpush1.bf16.xpose.msra.mxu0 %v1016
        %1032 = vmatprep.subr.bf16.mxu0 0
        %1033 = vmatpush1.bf16.xpose.msra.mxu0 %v1013
        %1034 = vmatprep.subr.bf16.mxu0 0
        %1035 = vmatpush2.bf16.xpose.msra.mxu0 0
        %1036 = vmatprep.subr.bf16.mxu0 0
        %1037 = vmatpush2.bf16.xpose.msra.mxu0 0
        %1038 = vmatprep.subr.bf16.mxu0 0
        %1039 = vmatpush2.bf16.xpose.msra.mxu0 0
        %1040 = vmatprep.subr.bf16.mxu0 0
        %1041 = vmatpush2.bf16.xpose.msra.mxu0 0
        %1042 = vmatprep.subr.bf16.mxu0 0
        %1043 = vmatpush2.bf16.xpose.msra.mxu0 0
        %1044 = vmatprep.subr.bf16.mxu0 0
        %1045 = vmatpush2.bf16.xpose.msra.mxu0 0
        %1046 = vmatprep.subr.bf16.mxu0 0
        %1047 = vmatpush2.bf16.xpose.msra.mxu0 0
        %1048 = vmatprep.subr.bf16.mxu0 0
        %1049 = vmatpush2.bf16.xpose.msra.mxu0 0
        %1050 = vmatprep.mubr.bf16.mxu0 0
        %1051 = vmatmul.mubr.bf16.gmra.mxu0 %v1010
        %v1052 = vpop.f32.mrf.mxu0
        %v1053 = vadd.f32 0.0, %v1052
        %v1054 = vpop.f32.mrf.mxu0
        %v1055 = vpop.f32.mrf.mxu0
        %v1056 = vpop.f32.mrf.mxu0
        %1057 = vdwg.mxu0
        %v1058 = vmul.f32 %v1053, 0.35355338
        %s1059 = scalar_lea.vmem %s394, 4 [#allocation2]
        %v1060 = vld [vmem:[%s1059] sm:$0xf]
        %v1061 = vunpack.c.l.bf16 %v1060
        %v1062 = vadd.f32 %v1058, %v1061
        %v1063 = vsel %vm731, %v1062, -inf
        %1064 = vmax.xlane.f32.xlu0 %v1063
        %v1065 = vpop.xlane.xlu0 %1064
        %v1066 = vsub.f32 %v1062, %v1065
        %v1067 = vmul.f32 %v1066, 1.442695
        %v1068 = vpow.pop %v1067
        %v1069 = vsel %vm731, %v1068, 0.0
        %1070 = vadd.xlane.f32.xlu0 %v1069
        %v1071 = vpop.xlane.xlu0 %1070
        %v1072 = vrcp.pop %v1071
        %v1073 = vmul.f32 %v1068, %v1072
        %v1074 = vpack.c.bf16 %v1073, %v1073
        %v1076 = vsel %vm731, %v1074, 0
        %v1079 = vsel %vm747, %v1008, 0
        %1081 = vmatprep.subr.bf16.mxu0 0
        %1082 = vmatpush1.bf16.msra.mxu0 0
        %1083 = vmatprep.subr.bf16.mxu0 0
        %1084 = vmatpush1.bf16.msra.mxu0 0
        %1085 = vmatprep.subr.bf16.mxu0 0
        %1086 = vmatpush1.bf16.msra.mxu0 0
        %1087 = vmatprep.subr.bf16.mxu0 0
        %1088 = vmatpush1.bf16.msra.mxu0 0
        %1089 = vmatprep.subr.bf16.mxu0 0
        %1090 = vmatpush1.bf16.msra.mxu0 0
        %1091 = vmatprep.subr.bf16.mxu0 0
        %1092 = vmatpush1.bf16.msra.mxu0 0
        %1093 = vmatprep.subr.bf16.mxu0 0
        %1094 = vmatpush1.bf16.msra.mxu0 %v1079
        %1095 = vmatprep.subr.bf16.mxu0 0
        %1096 = vmatpush1.bf16.msra.mxu0 %v1007
        %1097 = vmatprep.subr.bf16.mxu0 0
        %1098 = vmatpush2.bf16.msra.mxu0 0
        %1099 = vmatprep.subr.bf16.mxu0 0
        %1100 = vmatpush2.bf16.msra.mxu0 0
        %1101 = vmatprep.subr.bf16.mxu0 0
        %1102 = vmatpush2.bf16.msra.mxu0 0
        %1103 = vmatprep.subr.bf16.mxu0 0
        %1104 = vmatpush2.bf16.msra.mxu0 0
        %1105 = vmatprep.subr.bf16.mxu0 0
        %1106 = vmatpush2.bf16.msra.mxu0 0
        %1107 = vmatprep.subr.bf16.mxu0 0
        %1108 = vmatpush2.bf16.msra.mxu0 0
        %1109 = vmatprep.subr.bf16.mxu0 0
        %1110 = vmatpush2.bf16.msra.mxu0 0
        %1111 = vmatprep.subr.bf16.mxu0 0
        %1112 = vmatpush2.bf16.msra.mxu0 0
        %1113 = vmatprep.mubr.bf16.mxu0 0
        %1114 = vmatmul.mubr.bf16.gmra.mxu0 %v1076
        %v1115 = vpop.f32.mrf.mxu0
        %v1116 = vadd.f32 0.0, %v1115
        %v1117 = vpop.f32.mrf.mxu0
        %v1118 = vpop.f32.mrf.mxu0
        %v1119 = vpop.f32.mrf.mxu0
        %1120 = vdwg.mxu0
        %v1121 = vpack.c.bf16 %v1116, %v1116
        %s1122 = scalar_lea.vmem %s5, 4
        %v1123 = vld [vmem:[%s1122] sm:$0xf]
        %v1125 = vsel %vm677, %v1121, 0
        %v1128 = vsel %vm747, %v1123, 0
        %1130 = vmatprep.subr.bf16.mxu0 0
        %1131 = vmatpush1.bf16.msra.mxu0 0
        %1132 = vmatprep.subr.bf16.mxu0 0
        %1133 = vmatpush1.bf16.msra.mxu0 0
        %1134 = vmatprep.subr.bf16.mxu0 0
        %1135 = vmatpush1.bf16.msra.mxu0 0
        %1136 = vmatprep.subr.bf16.mxu0 0
        %1137 = vmatpush1.bf16.msra.mxu0 0
        %1138 = vmatprep.subr.bf16.mxu0 0
        %1139 = vmatpush1.bf16.msra.mxu0 0
        %1140 = vmatprep.subr.bf16.mxu0 0
        %1141 = vmatpush1.bf16.msra.mxu0 0
        %1142 = vmatprep.subr.bf16.mxu0 0
        %1143 = vmatpush1.bf16.msra.mxu0 0
        %1144 = vmatprep.subr.bf16.mxu0 0
        %1145 = vmatpush1.bf16.msra.mxu0 %v1128
        %1146 = vmatprep.subr.bf16.mxu0 0
        %1147 = vmatpush2.bf16.msra.mxu0 0
        %1148 = vmatprep.subr.bf16.mxu0 0
        %1149 = vmatpush2.bf16.msra.mxu0 0
        %1150 = vmatprep.subr.bf16.mxu0 0
        %1151 = vmatpush2.bf16.msra.mxu0 0
        %1152 = vmatprep.subr.bf16.mxu0 0
        %1153 = vmatpush2.bf16.msra.mxu0 0
        %1154 = vmatprep.subr.bf16.mxu0 0
        %1155 = vmatpush2.bf16.msra.mxu0 0
        %1156 = vmatprep.subr.bf16.mxu0 0
        %1157 = vmatpush2.bf16.msra.mxu0 0
        %1158 = vmatprep.subr.bf16.mxu0 0
        %1159 = vmatpush2.bf16.msra.mxu0 0
        %1160 = vmatprep.subr.bf16.mxu0 0
        %1161 = vmatpush2.bf16.msra.mxu0 0
        %1162 = vmatprep.mubr.bf16.mxu0 0
        %1163 = vmatmul.mubr.bf16.gmra.mxu0 %v1125
        %v1164 = vpop.f32.mrf.mxu0
        %v1165 = vadd.f32 0.0, %v1164
        %v1166 = vpop.f32.mrf.mxu0
        %v1167 = vpop.f32.mrf.mxu0
        %v1168 = vpop.f32.mrf.mxu0
        %1169 = vdwg.mxu0
        %v1171 = vsel %vm677, %v791, 0
        %v1174 = vsel %vm747, %v792, 0
        %1176 = vmatprep.subr.bf16.mxu0 0
        %1177 = vmatpush1.bf16.msra.mxu0 0
        %1178 = vmatprep.subr.bf16.mxu0 0
        %1179 = vmatpush1.bf16.msra.mxu0 0
        %1180 = vmatprep.subr.bf16.mxu0 0
        %1181 = vmatpush1.bf16.msra.mxu0 0
        %1182 = vmatprep.subr.bf16.mxu0 0
        %1183 = vmatpush1.bf16.msra.mxu0 0
        %1184 = vmatprep.subr.bf16.mxu0 0
        %1185 = vmatpush1.bf16.msra.mxu0 0
        %1186 = vmatprep.subr.bf16.mxu0 0
        %1187 = vmatpush1.bf16.msra.mxu0 0
        %1188 = vmatprep.subr.bf16.mxu0 0
        %1189 = vmatpush1.bf16.msra.mxu0 0
        %1190 = vmatprep.subr.bf16.mxu0 0
        %1191 = vmatpush1.bf16.msra.mxu0 %v1174
        %1192 = vmatprep.subr.bf16.mxu0 0
        %1193 = vmatpush2.bf16.msra.mxu0 0
        %1194 = vmatprep.subr.bf16.mxu0 0
        %1195 = vmatpush2.bf16.msra.mxu0 0
        %1196 = vmatprep.subr.bf16.mxu0 0
        %1197 = vmatpush2.bf16.msra.mxu0 0
        %1198 = vmatprep.subr.bf16.mxu0 0
        %1199 = vmatpush2.bf16.msra.mxu0 0
        %1200 = vmatprep.subr.bf16.mxu0 0
        %1201 = vmatpush2.bf16.msra.mxu0 0
        %1202 = vmatprep.subr.bf16.mxu0 0
        %1203 = vmatpush2.bf16.msra.mxu0 0
        %1204 = vmatprep.subr.bf16.mxu0 0
        %1205 = vmatpush2.bf16.msra.mxu0 0
        %1206 = vmatprep.subr.bf16.mxu0 0
        %1207 = vmatpush2.bf16.msra.mxu0 0
        %1208 = vmatprep.mubr.bf16.mxu0 0
        %1209 = vmatmul.mubr.bf16.gmra.mxu0 %v1171
        %v1210 = vpop.f32.mrf.mxu0
        %v1211 = vadd.f32 %v1165, %v1210
        %v1212 = vpop.f32.mrf.mxu0
        %v1213 = vpop.f32.mrf.mxu0
        %v1214 = vpop.f32.mrf.mxu0
        %1215 = vdwg.mxu0
        %s1216 = scalar_lea.vmem %s3, 32
        %v1217 = vld [vmem:[%s1216] sm:$0xf]
        %v1218 = vld [vmem:[%s1216 + $0x4] sm:$0xf]
        %v1219 = vld [vmem:[%s1216 + $0x8] sm:$0xf]
        %v1220 = vld [vmem:[%s1216 + $0xc] sm:$0xf]
        %s1221 = scalar_lea.vmem %s4, 2
        %v1222 = vld [vmem:[%s1221] sm:$0x1]
        %v1224 = vlaneseq
        %v1225 = vshrl.u32 %v1224, 7
        %v1226 = vsub.s32 0, %v1225
        %v1227 = vrot.slane %v1222, %v1226
        %v1233 = vunpack.c.l.b16 %v1217
        %v1234 = vunpack.c.l.b16 %v1218
        %v1235 = vunpack.c.l.b16 %v1219
        %v1236 = vunpack.c.l.b16 %v1220
        %v1237 = vpack.c.b16 %v1234, %v1233
        %v1238 = vpack.c.b16 %v1236, %v1235
        %1241 = vmatprep.subr.bf16.mxu0 0
        %1242 = vmatpush1.bf16.msra.mxu0 0
        %1243 = vmatprep.subr.bf16.mxu0 0
        %1244 = vmatpush1.bf16.msra.mxu0 0
        %1245 = vmatprep.subr.bf16.mxu0 0
        %1246 = vmatpush1.bf16.msra.mxu0 0
        %1247 = vmatprep.subr.bf16.mxu0 0
        %1248 = vmatpush1.bf16.msra.mxu0 0
        %1249 = vmatprep.subr.bf16.mxu0 0
        %1250 = vmatpush1.bf16.msra.mxu0 0
        %1251 = vmatprep.subr.bf16.mxu0 0
        %1252 = vmatpush1.bf16.msra.mxu0 0
        %1253 = vmatprep.subr.bf16.mxu0 0
        %1254 = vmatpush1.bf16.msra.mxu0 %v1238
        %1255 = vmatprep.subr.bf16.mxu0 0
        %1256 = vmatpush1.bf16.msra.mxu0 %v1237
        %1257 = vmatprep.subr.bf16.mxu0 0
        %1258 = vmatpush2.bf16.msra.mxu0 0
        %1259 = vmatprep.subr.bf16.mxu0 0
        %1260 = vmatpush2.bf16.msra.mxu0 0
        %1261 = vmatprep.subr.bf16.mxu0 0
        %1262 = vmatpush2.bf16.msra.mxu0 0
        %1263 = vmatprep.subr.bf16.mxu0 0
        %1264 = vmatpush2.bf16.msra.mxu0 0
        %1265 = vmatprep.subr.bf16.mxu0 0
        %1266 = vmatpush2.bf16.msra.mxu0 0
        %1267 = vmatprep.subr.bf16.mxu0 0
        %1268 = vmatpush2.bf16.msra.mxu0 0
        %1269 = vmatprep.subr.bf16.mxu0 0
        %1270 = vmatpush2.bf16.msra.mxu0 0
        %1271 = vmatprep.subr.bf16.mxu0 0
        %1272 = vmatpush2.bf16.msra.mxu0 0
        %1273 = vmatprep.mubr.bf16.mxu0 0
        %1274 = vmatmul.mubr.bf16.gmra.mxu0 %v481
        %v1275 = vpop.f32.mrf.mxu0
        %v1276 = vadd.f32 %v1227, %v1275
        %v1277 = vpop.f32.mrf.mxu0
        %v1278 = vpop.f32.mrf.mxu0
        %v1279 = vpop.f32.mrf.mxu0
        %1280 = vdwg.mxu0
        %v1281 = vpack.c.bf16 %v1276, %v1276
        %s1282 = scalar_lea.vmem %s3, 96
        %v1283 = vld [vmem:[%s1282] sm:$0xf]
        %v1284 = vld [vmem:[%s1282 + $0x4] sm:$0xf]
        %v1285 = vld [vmem:[%s1282 + $0x8] sm:$0xf]
        %v1286 = vld [vmem:[%s1282 + $0xc] sm:$0xf]
        %s1287 = scalar_lea.vmem %s4, 6
        %v1288 = vld [vmem:[%s1287] sm:$0x1]
        %v1290 = vlaneseq
        %v1291 = vshrl.u32 %v1290, 7
        %v1292 = vsub.s32 0, %v1291
        %v1293 = vrot.slane %v1288, %v1292
        %v1299 = vunpack.c.l.b16 %v1283
        %v1300 = vunpack.c.l.b16 %v1284
        %v1301 = vunpack.c.l.b16 %v1285
        %v1302 = vunpack.c.l.b16 %v1286
        %v1303 = vpack.c.b16 %v1300, %v1299
        %v1304 = vpack.c.b16 %v1302, %v1301
        %1307 = vmatprep.subr.bf16.mxu0 0
        %1308 = vmatpush1.bf16.msra.mxu0 0
        %1309 = vmatprep.subr.bf16.mxu0 0
        %1310 = vmatpush1.bf16.msra.mxu0 0
        %1311 = vmatprep.subr.bf16.mxu0 0
        %1312 = vmatpush1.bf16.msra.mxu0 0
        %1313 = vmatprep.subr.bf16.mxu0 0
        %1314 = vmatpush1.bf16.msra.mxu0 0
        %1315 = vmatprep.subr.bf16.mxu0 0
        %1316 = vmatpush1.bf16.msra.mxu0 0
        %1317 = vmatprep.subr.bf16.mxu0 0
        %1318 = vmatpush1.bf16.msra.mxu0 0
        %1319 = vmatprep.subr.bf16.mxu0 0
        %1320 = vmatpush1.bf16.msra.mxu0 %v1304
        %1321 = vmatprep.subr.bf16.mxu0 0
        %1322 = vmatpush1.bf16.msra.mxu0 %v1303
        %1323 = vmatprep.subr.bf16.mxu0 0
        %1324 = vmatpush2.bf16.msra.mxu0 0
        %1325 = vmatprep.subr.bf16.mxu0 0
        %1326 = vmatpush2.bf16.msra.mxu0 0
        %1327 = vmatprep.subr.bf16.mxu0 0
        %1328 = vmatpush2.bf16.msra.mxu0 0
        %1329 = vmatprep.subr.bf16.mxu0 0
        %1330 = vmatpush2.bf16.msra.mxu0 0
        %1331 = vmatprep.subr.bf16.mxu0 0
        %1332 = vmatpush2.bf16.msra.mxu0 0
        %1333 = vmatprep.subr.bf16.mxu0 0
        %1334 = vmatpush2.bf16.msra.mxu0 0
        %1335 = vmatprep.subr.bf16.mxu0 0
        %1336 = vmatpush2.bf16.msra.mxu0 0
        %1337 = vmatprep.subr.bf16.mxu0 0
        %1338 = vmatpush2.bf16.msra.mxu0 0
        %1339 = vmatprep.mubr.bf16.mxu0 0
        %1340 = vmatmul.mubr.bf16.gmra.mxu0 %v550
        %v1341 = vpop.f32.mrf.mxu0
        %v1342 = vadd.f32 %v1293, %v1341
        %v1343 = vpop.f32.mrf.mxu0
        %v1344 = vpop.f32.mrf.mxu0
        %v1345 = vadd.f32 %v1293, %v1344
        %v1346 = vpop.f32.mrf.mxu0
        %1347 = vmatprep.mubr.bf16.mxu0 0
        %1348 = vmatmul.mubr.bf16.gmra.mxu0 %v481
        %v1349 = vpop.f32.mrf.mxu0
        %v1350 = vadd.f32 %v1293, %v1349
        %v1351 = vpop.f32.mrf.mxu0
        %v1352 = vpop.f32.mrf.mxu0
        %v1353 = vpop.f32.mrf.mxu0
        %1354 = vdwg.mxu0
        %v1355 = vpack.c.bf16 %v1345, %v1342
        %v1356 = vpack.c.bf16 %v1350, %v1350
        %s1357 = scalar_lea.vmem %s3, 160
        %v1358 = vld [vmem:[%s1357] sm:$0xf]
        %v1359 = vld [vmem:[%s1357 + $0x4] sm:$0xf]
        %v1360 = vld [vmem:[%s1357 + $0x8] sm:$0xf]
        %v1361 = vld [vmem:[%s1357 + $0xc] sm:$0xf]
        %s1362 = scalar_lea.vmem %s4, 10
        %v1363 = vld [vmem:[%s1362] sm:$0x1]
        %v1365 = vlaneseq
        %v1366 = vshrl.u32 %v1365, 7
        %v1367 = vsub.s32 0, %v1366
        %v1368 = vrot.slane %v1363, %v1367
        %v1374 = vunpack.c.l.b16 %v1358
        %v1375 = vunpack.c.l.b16 %v1359
        %v1376 = vunpack.c.l.b16 %v1360
        %v1377 = vunpack.c.l.b16 %v1361
        %v1378 = vpack.c.b16 %v1375, %v1374
        %v1379 = vpack.c.b16 %v1377, %v1376
        %1382 = vmatprep.subr.bf16.mxu0 0
        %1383 = vmatpush1.bf16.msra.mxu0 0
        %1384 = vmatprep.subr.bf16.mxu0 0
        %1385 = vmatpush1.bf16.msra.mxu0 0
        %1386 = vmatprep.subr.bf16.mxu0 0
        %1387 = vmatpush1.bf16.msra.mxu0 0
        %1388 = vmatprep.subr.bf16.mxu0 0
        %1389 = vmatpush1.bf16.msra.mxu0 0
        %1390 = vmatprep.subr.bf16.mxu0 0
        %1391 = vmatpush1.bf16.msra.mxu0 0
        %1392 = vmatprep.subr.bf16.mxu0 0
        %1393 = vmatpush1.bf16.msra.mxu0 0
        %1394 = vmatprep.subr.bf16.mxu0 0
        %1395 = vmatpush1.bf16.msra.mxu0 %v1379
        %1396 = vmatprep.subr.bf16.mxu0 0
        %1397 = vmatpush1.bf16.msra.mxu0 %v1378
        %1398 = vmatprep.subr.bf16.mxu0 0
        %1399 = vmatpush2.bf16.msra.mxu0 0
        %1400 = vmatprep.subr.bf16.mxu0 0
        %1401 = vmatpush2.bf16.msra.mxu0 0
        %1402 = vmatprep.subr.bf16.mxu0 0
        %1403 = vmatpush2.bf16.msra.mxu0 0
        %1404 = vmatprep.subr.bf16.mxu0 0
        %1405 = vmatpush2.bf16.msra.mxu0 0
        %1406 = vmatprep.subr.bf16.mxu0 0
        %1407 = vmatpush2.bf16.msra.mxu0 0
        %1408 = vmatprep.subr.bf16.mxu0 0
        %1409 = vmatpush2.bf16.msra.mxu0 0
        %1410 = vmatprep.subr.bf16.mxu0 0
        %1411 = vmatpush2.bf16.msra.mxu0 0
        %1412 = vmatprep.subr.bf16.mxu0 0
        %1413 = vmatpush2.bf16.msra.mxu0 0
        %1414 = vmatprep.mubr.bf16.mxu0 0
        %1415 = vmatmul.mubr.bf16.gmra.mxu0 %v550
        %v1416 = vpop.f32.mrf.mxu0
        %v1417 = vadd.f32 %v1368, %v1416
        %v1418 = vpop.f32.mrf.mxu0
        %v1419 = vpop.f32.mrf.mxu0
        %v1420 = vadd.f32 %v1368, %v1419
        %v1421 = vpop.f32.mrf.mxu0
        %1422 = vmatprep.mubr.bf16.mxu0 0
        %1423 = vmatmul.mubr.bf16.gmra.mxu0 %v481
        %v1424 = vpop.f32.mrf.mxu0
        %v1425 = vadd.f32 %v1368, %v1424
        %v1426 = vpop.f32.mrf.mxu0
        %v1427 = vpop.f32.mrf.mxu0
        %v1428 = vpop.f32.mrf.mxu0
        %1429 = vdwg.mxu0
        %v1430 = vpack.c.bf16 %v1420, %v1417
        %v1431 = vpack.c.bf16 %v1425, %v1425
        %v1433 = vsel %vm677, %v1281, 0
        %v1436 = vsel %vm677, %v1355, 0
        %v1439 = vsel %vm677, %v1356, 0
        %1441 = vmatprep.subr.bf16.mxu0 0
        %1442 = vmatpush1.bf16.xpose.msra.mxu0 0
        %1443 = vmatprep.subr.bf16.mxu0 0
        %1444 = vmatpush1.bf16.xpose.msra.mxu0 0
        %1445 = vmatprep.subr.bf16.mxu0 0
        %1446 = vmatpush1.bf16.xpose.msra.mxu0 0
        %1447 = vmatprep.subr.bf16.mxu0 0
        %1448 = vmatpush1.bf16.xpose.msra.mxu0 0
        %1449 = vmatprep.subr.bf16.mxu0 0
        %1450 = vmatpush1.bf16.xpose.msra.mxu0 0
        %1451 = vmatprep.subr.bf16.mxu0 0
        %1452 = vmatpush1.bf16.xpose.msra.mxu0 0
        %1453 = vmatprep.subr.bf16.mxu0 0
        %1454 = vmatpush1.bf16.xpose.msra.mxu0 %v1439
        %1455 = vmatprep.subr.bf16.mxu0 0
        %1456 = vmatpush1.bf16.xpose.msra.mxu0 %v1436
        %1457 = vmatprep.subr.bf16.mxu0 0
        %1458 = vmatpush2.bf16.xpose.msra.mxu0 0
        %1459 = vmatprep.subr.bf16.mxu0 0
        %1460 = vmatpush2.bf16.xpose.msra.mxu0 0
        %1461 = vmatprep.subr.bf16.mxu0 0
        %1462 = vmatpush2.bf16.xpose.msra.mxu0 0
        %1463 = vmatprep.subr.bf16.mxu0 0
        %1464 = vmatpush2.bf16.xpose.msra.mxu0 0
        %1465 = vmatprep.subr.bf16.mxu0 0
        %1466 = vmatpush2.bf16.xpose.msra.mxu0 0
        %1467 = vmatprep.subr.bf16.mxu0 0
        %1468 = vmatpush2.bf16.xpose.msra.mxu0 0
        %1469 = vmatprep.subr.bf16.mxu0 0
        %1470 = vmatpush2.bf16.xpose.msra.mxu0 0
        %1471 = vmatprep.subr.bf16.mxu0 0
        %1472 = vmatpush2.bf16.xpose.msra.mxu0 0
        %1473 = vmatprep.mubr.bf16.mxu0 0
        %1474 = vmatmul.mubr.bf16.gmra.mxu0 %v1433
        %v1475 = vpop.f32.mrf.mxu0
        %v1476 = vadd.f32 0.0, %v1475
        %v1477 = vpop.f32.mrf.mxu0
        %v1478 = vpop.f32.mrf.mxu0
        %v1479 = vpop.f32.mrf.mxu0
        %1480 = vdwg.mxu0
        %v1481 = vmul.f32 %v1476, 0.35355338
        %s1482 = scalar_lea.vmem %s394, 8 [#allocation2]
        %v1483 = vld [vmem:[%s1482] sm:$0xf]
        %v1484 = vunpack.c.l.bf16 %v1483
        %v1485 = vadd.f32 %v1481, %v1484
        %v1486 = vsel %vm731, %v1485, -inf
        %1487 = vmax.xlane.f32.xlu0 %v1486
        %v1488 = vpop.xlane.xlu0 %1487
        %v1489 = vsub.f32 %v1485, %v1488
        %v1490 = vmul.f32 %v1489, 1.442695
        %v1491 = vpow.pop %v1490
        %v1492 = vsel %vm731, %v1491, 0.0
        %1493 = vadd.xlane.f32.xlu0 %v1492
        %v1494 = vpop.xlane.xlu0 %1493
        %v1495 = vrcp.pop %v1494
        %v1496 = vmul.f32 %v1491, %v1495
        %v1497 = vpack.c.bf16 %v1496, %v1496
        %v1499 = vsel %vm731, %v1497, 0
        %v1502 = vsel %vm747, %v1431, 0
        %1504 = vmatprep.subr.bf16.mxu0 0
        %1505 = vmatpush1.bf16.msra.mxu0 0
        %1506 = vmatprep.subr.bf16.mxu0 0
        %1507 = vmatpush1.bf16.msra.mxu0 0
        %1508 = vmatprep.subr.bf16.mxu0 0
        %1509 = vmatpush1.bf16.msra.mxu0 0
        %1510 = vmatprep.subr.bf16.mxu0 0
        %1511 = vmatpush1.bf16.msra.mxu0 0
        %1512 = vmatprep.subr.bf16.mxu0 0
        %1513 = vmatpush1.bf16.msra.mxu0 0
        %1514 = vmatprep.subr.bf16.mxu0 0
        %1515 = vmatpush1.bf16.msra.mxu0 0
        %1516 = vmatprep.subr.bf16.mxu0 0
        %1517 = vmatpush1.bf16.msra.mxu0 %v1502
        %1518 = vmatprep.subr.bf16.mxu0 0
        %1519 = vmatpush1.bf16.msra.mxu0 %v1430
        %1520 = vmatprep.subr.bf16.mxu0 0
        %1521 = vmatpush2.bf16.msra.mxu0 0
        %1522 = vmatprep.subr.bf16.mxu0 0
        %1523 = vmatpush2.bf16.msra.mxu0 0
        %1524 = vmatprep.subr.bf16.mxu0 0
        %1525 = vmatpush2.bf16.msra.mxu0 0
        %1526 = vmatprep.subr.bf16.mxu0 0
        %1527 = vmatpush2.bf16.msra.mxu0 0
        %1528 = vmatprep.subr.bf16.mxu0 0
        %1529 = vmatpush2.bf16.msra.mxu0 0
        %1530 = vmatprep.subr.bf16.mxu0 0
        %1531 = vmatpush2.bf16.msra.mxu0 0
        %1532 = vmatprep.subr.bf16.mxu0 0
        %1533 = vmatpush2.bf16.msra.mxu0 0
        %1534 = vmatprep.subr.bf16.mxu0 0
        %1535 = vmatpush2.bf16.msra.mxu0 0
        %1536 = vmatprep.mubr.bf16.mxu0 0
        %1537 = vmatmul.mubr.bf16.gmra.mxu0 %v1499
        %v1538 = vpop.f32.mrf.mxu0
        %v1539 = vadd.f32 0.0, %v1538
        %v1540 = vpop.f32.mrf.mxu0
        %v1541 = vpop.f32.mrf.mxu0
        %v1542 = vpop.f32.mrf.mxu0
        %1543 = vdwg.mxu0
        %v1544 = vpack.c.bf16 %v1539, %v1539
        %s1545 = scalar_lea.vmem %s5, 8
        %v1546 = vld [vmem:[%s1545] sm:$0xf]
        %v1548 = vsel %vm677, %v1544, 0
        %v1551 = vsel %vm747, %v1546, 0
        %1553 = vmatprep.subr.bf16.mxu0 0
        %1554 = vmatpush1.bf16.msra.mxu0 0
        %1555 = vmatprep.subr.bf16.mxu0 0
        %1556 = vmatpush1.bf16.msra.mxu0 0
        %1557 = vmatprep.subr.bf16.mxu0 0
        %1558 = vmatpush1.bf16.msra.mxu0 0
        %1559 = vmatprep.subr.bf16.mxu0 0
        %1560 = vmatpush1.bf16.msra.mxu0 0
        %1561 = vmatprep.subr.bf16.mxu0 0
        %1562 = vmatpush1.bf16.msra.mxu0 0
        %1563 = vmatprep.subr.bf16.mxu0 0
        %1564 = vmatpush1.bf16.msra.mxu0 0
        %1565 = vmatprep.subr.bf16.mxu0 0
        %1566 = vmatpush1.bf16.msra.mxu0 0
        %1567 = vmatprep.subr.bf16.mxu0 0
        %1568 = vmatpush1.bf16.msra.mxu0 %v1551
        %1569 = vmatprep.subr.bf16.mxu0 0
        %1570 = vmatpush2.bf16.msra.mxu0 0
        %1571 = vmatprep.subr.bf16.mxu0 0
        %1572 = vmatpush2.bf16.msra.mxu0 0
        %1573 = vmatprep.subr.bf16.mxu0 0
        %1574 = vmatpush2.bf16.msra.mxu0 0
        %1575 = vmatprep.subr.bf16.mxu0 0
        %1576 = vmatpush2.bf16.msra.mxu0 0
        %1577 = vmatprep.subr.bf16.mxu0 0
        %1578 = vmatpush2.bf16.msra.mxu0 0
        %1579 = vmatprep.subr.bf16.mxu0 0
        %1580 = vmatpush2.bf16.msra.mxu0 0
        %1581 = vmatprep.subr.bf16.mxu0 0
        %1582 = vmatpush2.bf16.msra.mxu0 0
        %1583 = vmatprep.subr.bf16.mxu0 0
        %1584 = vmatpush2.bf16.msra.mxu0 0
        %1585 = vmatprep.mubr.bf16.mxu0 0
        %1586 = vmatmul.mubr.bf16.gmra.mxu0 %v1548
        %v1587 = vpop.f32.mrf.mxu0
        %v1588 = vadd.f32 0.0, %v1587
        %v1589 = vpop.f32.mrf.mxu0
        %v1590 = vpop.f32.mrf.mxu0
        %v1591 = vpop.f32.mrf.mxu0
        %1592 = vdwg.mxu0
        %v1593 = vadd.f32 %v1211, %v1588
        %s1594 = scalar_lea.vmem %s3, 48
        %v1595 = vld [vmem:[%s1594] sm:$0xf]
        %v1596 = vld [vmem:[%s1594 + $0x4] sm:$0xf]
        %v1597 = vld [vmem:[%s1594 + $0x8] sm:$0xf]
        %v1598 = vld [vmem:[%s1594 + $0xc] sm:$0xf]
        %s1599 = scalar_lea.vmem %s4, 3
        %v1600 = vld [vmem:[%s1599] sm:$0x1]
        %v1602 = vlaneseq
        %v1603 = vshrl.u32 %v1602, 7
        %v1604 = vsub.s32 0, %v1603
        %v1605 = vrot.slane %v1600, %v1604
        %v1611 = vunpack.c.l.b16 %v1595
        %v1612 = vunpack.c.l.b16 %v1596
        %v1613 = vunpack.c.l.b16 %v1597
        %v1614 = vunpack.c.l.b16 %v1598
        %v1615 = vpack.c.b16 %v1612, %v1611
        %v1616 = vpack.c.b16 %v1614, %v1613
        %1619 = vmatprep.subr.bf16.mxu0 0
        %1620 = vmatpush1.bf16.msra.mxu0 0
        %1621 = vmatprep.subr.bf16.mxu0 0
        %1622 = vmatpush1.bf16.msra.mxu0 0
        %1623 = vmatprep.subr.bf16.mxu0 0
        %1624 = vmatpush1.bf16.msra.mxu0 0
        %1625 = vmatprep.subr.bf16.mxu0 0
        %1626 = vmatpush1.bf16.msra.mxu0 0
        %1627 = vmatprep.subr.bf16.mxu0 0
        %1628 = vmatpush1.bf16.msra.mxu0 0
        %1629 = vmatprep.subr.bf16.mxu0 0
        %1630 = vmatpush1.bf16.msra.mxu0 0
        %1631 = vmatprep.subr.bf16.mxu0 0
        %1632 = vmatpush1.bf16.msra.mxu0 %v1616
        %1633 = vmatprep.subr.bf16.mxu0 0
        %1634 = vmatpush1.bf16.msra.mxu0 %v1615
        %1635 = vmatprep.subr.bf16.mxu0 0
        %1636 = vmatpush2.bf16.msra.mxu0 0
        %1637 = vmatprep.subr.bf16.mxu0 0
        %1638 = vmatpush2.bf16.msra.mxu0 0
        %1639 = vmatprep.subr.bf16.mxu0 0
        %1640 = vmatpush2.bf16.msra.mxu0 0
        %1641 = vmatprep.subr.bf16.mxu0 0
        %1642 = vmatpush2.bf16.msra.mxu0 0
        %1643 = vmatprep.subr.bf16.mxu0 0
        %1644 = vmatpush2.bf16.msra.mxu0 0
        %1645 = vmatprep.subr.bf16.mxu0 0
        %1646 = vmatpush2.bf16.msra.mxu0 0
        %1647 = vmatprep.subr.bf16.mxu0 0
        %1648 = vmatpush2.bf16.msra.mxu0 0
        %1649 = vmatprep.subr.bf16.mxu0 0
        %1650 = vmatpush2.bf16.msra.mxu0 0
        %1651 = vmatprep.mubr.bf16.mxu0 0
        %1652 = vmatmul.mubr.bf16.gmra.mxu0 %v481
        %v1653 = vpop.f32.mrf.mxu0
        %v1654 = vadd.f32 %v1605, %v1653
        %v1655 = vpop.f32.mrf.mxu0
        %v1656 = vpop.f32.mrf.mxu0
        %v1657 = vpop.f32.mrf.mxu0
        %1658 = vdwg.mxu0
        %v1659 = vpack.c.bf16 %v1654, %v1654
        %s1660 = scalar_lea.vmem %s3, 112
        %v1661 = vld [vmem:[%s1660] sm:$0xf]
        %v1662 = vld [vmem:[%s1660 + $0x4] sm:$0xf]
        %v1663 = vld [vmem:[%s1660 + $0x8] sm:$0xf]
        %v1664 = vld [vmem:[%s1660 + $0xc] sm:$0xf]
        %s1665 = scalar_lea.vmem %s4, 7
        %v1666 = vld [vmem:[%s1665] sm:$0x1]
        %v1668 = vlaneseq
        %v1669 = vshrl.u32 %v1668, 7
        %v1670 = vsub.s32 0, %v1669
        %v1671 = vrot.slane %v1666, %v1670
        %v1677 = vunpack.c.l.b16 %v1661
        %v1678 = vunpack.c.l.b16 %v1662
        %v1679 = vunpack.c.l.b16 %v1663
        %v1680 = vunpack.c.l.b16 %v1664
        %v1681 = vpack.c.b16 %v1678, %v1677
        %v1682 = vpack.c.b16 %v1680, %v1679
        %1685 = vmatprep.subr.bf16.mxu0 0
        %1686 = vmatpush1.bf16.msra.mxu0 0
        %1687 = vmatprep.subr.bf16.mxu0 0
        %1688 = vmatpush1.bf16.msra.mxu0 0
        %1689 = vmatprep.subr.bf16.mxu0 0
        %1690 = vmatpush1.bf16.msra.mxu0 0
        %1691 = vmatprep.subr.bf16.mxu0 0
        %1692 = vmatpush1.bf16.msra.mxu0 0
        %1693 = vmatprep.subr.bf16.mxu0 0
        %1694 = vmatpush1.bf16.msra.mxu0 0
        %1695 = vmatprep.subr.bf16.mxu0 0
        %1696 = vmatpush1.bf16.msra.mxu0 0
        %1697 = vmatprep.subr.bf16.mxu0 0
        %1698 = vmatpush1.bf16.msra.mxu0 %v1682
        %1699 = vmatprep.subr.bf16.mxu0 0
        %1700 = vmatpush1.bf16.msra.mxu0 %v1681
        %1701 = vmatprep.subr.bf16.mxu0 0
        %1702 = vmatpush2.bf16.msra.mxu0 0
        %1703 = vmatprep.subr.bf16.mxu0 0
        %1704 = vmatpush2.bf16.msra.mxu0 0
        %1705 = vmatprep.subr.bf16.mxu0 0
        %1706 = vmatpush2.bf16.msra.mxu0 0
        %1707 = vmatprep.subr.bf16.mxu0 0
        %1708 = vmatpush2.bf16.msra.mxu0 0
        %1709 = vmatprep.subr.bf16.mxu0 0
        %1710 = vmatpush2.bf16.msra.mxu0 0
        %1711 = vmatprep.subr.bf16.mxu0 0
        %1712 = vmatpush2.bf16.msra.mxu0 0
        %1713 = vmatprep.subr.bf16.mxu0 0
        %1714 = vmatpush2.bf16.msra.mxu0 0
        %1715 = vmatprep.subr.bf16.mxu0 0
        %1716 = vmatpush2.bf16.msra.mxu0 0
        %1717 = vmatprep.mubr.bf16.mxu0 0
        %1718 = vmatmul.mubr.bf16.gmra.mxu0 %v550
        %v1719 = vpop.f32.mrf.mxu0
        %v1720 = vadd.f32 %v1671, %v1719
        %v1721 = vpop.f32.mrf.mxu0
        %v1722 = vpop.f32.mrf.mxu0
        %v1723 = vadd.f32 %v1671, %v1722
        %v1724 = vpop.f32.mrf.mxu0
        %1725 = vmatprep.mubr.bf16.mxu0 0
        %1726 = vmatmul.mubr.bf16.gmra.mxu0 %v481
        %v1727 = vpop.f32.mrf.mxu0
        %v1728 = vadd.f32 %v1671, %v1727
        %v1729 = vpop.f32.mrf.mxu0
        %v1730 = vpop.f32.mrf.mxu0
        %v1731 = vpop.f32.mrf.mxu0
        %1732 = vdwg.mxu0
        %v1733 = vpack.c.bf16 %v1723, %v1720
        %v1734 = vpack.c.bf16 %v1728, %v1728
        %s1735 = scalar_lea.vmem %s3, 176
        %v1736 = vld [vmem:[%s1735] sm:$0xf]
        %v1737 = vld [vmem:[%s1735 + $0x4] sm:$0xf]
        %v1738 = vld [vmem:[%s1735 + $0x8] sm:$0xf]
        %v1739 = vld [vmem:[%s1735 + $0xc] sm:$0xf]
        %s1740 = scalar_lea.vmem %s4, 11
        %v1741 = vld [vmem:[%s1740] sm:$0x1]
        %v1743 = vlaneseq
        %v1744 = vshrl.u32 %v1743, 7
        %v1745 = vsub.s32 0, %v1744
        %v1746 = vrot.slane %v1741, %v1745
        %v1752 = vunpack.c.l.b16 %v1736
        %v1753 = vunpack.c.l.b16 %v1737
        %v1754 = vunpack.c.l.b16 %v1738
        %v1755 = vunpack.c.l.b16 %v1739
        %v1756 = vpack.c.b16 %v1753, %v1752
        %v1757 = vpack.c.b16 %v1755, %v1754
        %1760 = vmatprep.subr.bf16.mxu0 0
        %1761 = vmatpush1.bf16.msra.mxu0 0
        %1762 = vmatprep.subr.bf16.mxu0 0
        %1763 = vmatpush1.bf16.msra.mxu0 0
        %1764 = vmatprep.subr.bf16.mxu0 0
        %1765 = vmatpush1.bf16.msra.mxu0 0
        %1766 = vmatprep.subr.bf16.mxu0 0
        %1767 = vmatpush1.bf16.msra.mxu0 0
        %1768 = vmatprep.subr.bf16.mxu0 0
        %1769 = vmatpush1.bf16.msra.mxu0 0
        %1770 = vmatprep.subr.bf16.mxu0 0
        %1771 = vmatpush1.bf16.msra.mxu0 0
        %1772 = vmatprep.subr.bf16.mxu0 0
        %1773 = vmatpush1.bf16.msra.mxu0 %v1757
        %1774 = vmatprep.subr.bf16.mxu0 0
        %1775 = vmatpush1.bf16.msra.mxu0 %v1756
        %1776 = vmatprep.subr.bf16.mxu0 0
        %1777 = vmatpush2.bf16.msra.mxu0 0
        %1778 = vmatprep.subr.bf16.mxu0 0
        %1779 = vmatpush2.bf16.msra.mxu0 0
        %1780 = vmatprep.subr.bf16.mxu0 0
        %1781 = vmatpush2.bf16.msra.mxu0 0
        %1782 = vmatprep.subr.bf16.mxu0 0
        %1783 = vmatpush2.bf16.msra.mxu0 0
        %1784 = vmatprep.subr.bf16.mxu0 0
        %1785 = vmatpush2.bf16.msra.mxu0 0
        %1786 = vmatprep.subr.bf16.mxu0 0
        %1787 = vmatpush2.bf16.msra.mxu0 0
        %1788 = vmatprep.subr.bf16.mxu0 0
        %1789 = vmatpush2.bf16.msra.mxu0 0
        %1790 = vmatprep.subr.bf16.mxu0 0
        %1791 = vmatpush2.bf16.msra.mxu0 0
        %1792 = vmatprep.mubr.bf16.mxu0 0
        %1793 = vmatmul.mubr.bf16.gmra.mxu0 %v550
        %v1794 = vpop.f32.mrf.mxu0
        %v1795 = vadd.f32 %v1746, %v1794
        %v1796 = vpop.f32.mrf.mxu0
        %v1797 = vpop.f32.mrf.mxu0
        %v1798 = vadd.f32 %v1746, %v1797
        %v1799 = vpop.f32.mrf.mxu0
        %1800 = vmatprep.mubr.bf16.mxu0 0
        %1801 = vmatmul.mubr.bf16.gmra.mxu0 %v481
        %v1802 = vpop.f32.mrf.mxu0
        %v1803 = vadd.f32 %v1746, %v1802
        %v1804 = vpop.f32.mrf.mxu0
        %v1805 = vpop.f32.mrf.mxu0
        %v1806 = vpop.f32.mrf.mxu0
        %1807 = vdwg.mxu0
        %v1808 = vpack.c.bf16 %v1798, %v1795
        %v1809 = vpack.c.bf16 %v1803, %v1803
        %v1811 = vsel %vm677, %v1659, 0
        %v1814 = vsel %vm677, %v1733, 0
        %v1817 = vsel %vm677, %v1734, 0
        %1819 = vmatprep.subr.bf16.mxu0 0
        %1820 = vmatpush1.bf16.xpose.msra.mxu0 0
        %1821 = vmatprep.subr.bf16.mxu0 0
        %1822 = vmatpush1.bf16.xpose.msra.mxu0 0
        %1823 = vmatprep.subr.bf16.mxu0 0
        %1824 = vmatpush1.bf16.xpose.msra.mxu0 0
        %1825 = vmatprep.subr.bf16.mxu0 0
        %1826 = vmatpush1.bf16.xpose.msra.mxu0 0
        %1827 = vmatprep.subr.bf16.mxu0 0
        %1828 = vmatpush1.bf16.xpose.msra.mxu0 0
        %1829 = vmatprep.subr.bf16.mxu0 0
        %1830 = vmatpush1.bf16.xpose.msra.mxu0 0
        %1831 = vmatprep.subr.bf16.mxu0 0
        %1832 = vmatpush1.bf16.xpose.msra.mxu0 %v1817
        %1833 = vmatprep.subr.bf16.mxu0 0
        %1834 = vmatpush1.bf16.xpose.msra.mxu0 %v1814
        %1835 = vmatprep.subr.bf16.mxu0 0
        %1836 = vmatpush2.bf16.xpose.msra.mxu0 0
        %1837 = vmatprep.subr.bf16.mxu0 0
        %1838 = vmatpush2.bf16.xpose.msra.mxu0 0
        %1839 = vmatprep.subr.bf16.mxu0 0
        %1840 = vmatpush2.bf16.xpose.msra.mxu0 0
        %1841 = vmatprep.subr.bf16.mxu0 0
        %1842 = vmatpush2.bf16.xpose.msra.mxu0 0
        %1843 = vmatprep.subr.bf16.mxu0 0
        %1844 = vmatpush2.bf16.xpose.msra.mxu0 0
        %1845 = vmatprep.subr.bf16.mxu0 0
        %1846 = vmatpush2.bf16.xpose.msra.mxu0 0
        %1847 = vmatprep.subr.bf16.mxu0 0
        %1848 = vmatpush2.bf16.xpose.msra.mxu0 0
        %1849 = vmatprep.subr.bf16.mxu0 0
        %1850 = vmatpush2.bf16.xpose.msra.mxu0 0
        %1851 = vmatprep.mubr.bf16.mxu0 0
        %1852 = vmatmul.mubr.bf16.gmra.mxu0 %v1811
        %v1853 = vpop.f32.mrf.mxu0
        %v1854 = vadd.f32 0.0, %v1853
        %v1855 = vpop.f32.mrf.mxu0
        %v1856 = vpop.f32.mrf.mxu0
        %v1857 = vpop.f32.mrf.mxu0
        %1858 = vdwg.mxu0
        %v1859 = vmul.f32 %v1854, 0.35355338
        %s1860 = scalar_lea.vmem %s394, 12 [#allocation2]
        %v1861 = vld [vmem:[%s1860] sm:$0xf]
        %v1862 = vunpack.c.l.bf16 %v1861
        %v1863 = vadd.f32 %v1859, %v1862
        %v1864 = vsel %vm731, %v1863, -inf
        %1865 = vmax.xlane.f32.xlu0 %v1864
        %v1866 = vpop.xlane.xlu0 %1865
        %v1867 = vsub.f32 %v1863, %v1866
        %v1868 = vmul.f32 %v1867, 1.442695
        %v1869 = vpow.pop %v1868
        %v1870 = vsel %vm731, %v1869, 0.0
        %1871 = vadd.xlane.f32.xlu0 %v1870
        %v1872 = vpop.xlane.xlu0 %1871
        %v1873 = vrcp.pop %v1872
        %v1874 = vmul.f32 %v1869, %v1873
        %v1875 = vpack.c.bf16 %v1874, %v1874
        %v1877 = vsel %vm731, %v1875, 0
        %v1880 = vsel %vm747, %v1809, 0
        %1882 = vmatprep.subr.bf16.mxu0 0
        %1883 = vmatpush1.bf16.msra.mxu0 0
        %1884 = vmatprep.subr.bf16.mxu0 0
        %1885 = vmatpush1.bf16.msra.mxu0 0
        %1886 = vmatprep.subr.bf16.mxu0 0
        %1887 = vmatpush1.bf16.msra.mxu0 0
        %1888 = vmatprep.subr.bf16.mxu0 0
        %1889 = vmatpush1.bf16.msra.mxu0 0
        %1890 = vmatprep.subr.bf16.mxu0 0
        %1891 = vmatpush1.bf16.msra.mxu0 0
        %1892 = vmatprep.subr.bf16.mxu0 0
        %1893 = vmatpush1.bf16.msra.mxu0 0
        %1894 = vmatprep.subr.bf16.mxu0 0
        %1895 = vmatpush1.bf16.msra.mxu0 %v1880
        %1896 = vmatprep.subr.bf16.mxu0 0
        %1897 = vmatpush1.bf16.msra.mxu0 %v1808
        %1898 = vmatprep.subr.bf16.mxu0 0
        %1899 = vmatpush2.bf16.msra.mxu0 0
        %1900 = vmatprep.subr.bf16.mxu0 0
        %1901 = vmatpush2.bf16.msra.mxu0 0
        %1902 = vmatprep.subr.bf16.mxu0 0
        %1903 = vmatpush2.bf16.msra.mxu0 0
        %1904 = vmatprep.subr.bf16.mxu0 0
        %1905 = vmatpush2.bf16.msra.mxu0 0
        %1906 = vmatprep.subr.bf16.mxu0 0
        %1907 = vmatpush2.bf16.msra.mxu0 0
        %1908 = vmatprep.subr.bf16.mxu0 0
        %1909 = vmatpush2.bf16.msra.mxu0 0
        %1910 = vmatprep.subr.bf16.mxu0 0
        %1911 = vmatpush2.bf16.msra.mxu0 0
        %1912 = vmatprep.subr.bf16.mxu0 0
        %1913 = vmatpush2.bf16.msra.mxu0 0
        %1914 = vmatprep.mubr.bf16.mxu0 0
        %1915 = vmatmul.mubr.bf16.gmra.mxu0 %v1877
        %v1916 = vpop.f32.mrf.mxu0
        %v1917 = vadd.f32 0.0, %v1916
        %v1918 = vpop.f32.mrf.mxu0
        %v1919 = vpop.f32.mrf.mxu0
        %v1920 = vpop.f32.mrf.mxu0
        %1921 = vdwg.mxu0
        %v1922 = vpack.c.bf16 %v1917, %v1917
        %s1923 = scalar_lea.vmem %s5, 12
        %v1924 = vld [vmem:[%s1923] sm:$0xf]
        %v1926 = vsel %vm677, %v1922, 0
        %v1929 = vsel %vm747, %v1924, 0
        %1931 = vmatprep.subr.bf16.mxu0 0
        %1932 = vmatpush1.bf16.msra.mxu0 0
        %1933 = vmatprep.subr.bf16.mxu0 0
        %1934 = vmatpush1.bf16.msra.mxu0 0
        %1935 = vmatprep.subr.bf16.mxu0 0
        %1936 = vmatpush1.bf16.msra.mxu0 0
        %1937 = vmatprep.subr.bf16.mxu0 0
        %1938 = vmatpush1.bf16.msra.mxu0 0
        %1939 = vmatprep.subr.bf16.mxu0 0
        %1940 = vmatpush1.bf16.msra.mxu0 0
        %1941 = vmatprep.subr.bf16.mxu0 0
        %1942 = vmatpush1.bf16.msra.mxu0 0
        %1943 = vmatprep.subr.bf16.mxu0 0
        %1944 = vmatpush1.bf16.msra.mxu0 0
        %1945 = vmatprep.subr.bf16.mxu0 0
        %1946 = vmatpush1.bf16.msra.mxu0 %v1929
        %1947 = vmatprep.subr.bf16.mxu0 0
        %1948 = vmatpush2.bf16.msra.mxu0 0
        %1949 = vmatprep.subr.bf16.mxu0 0
        %1950 = vmatpush2.bf16.msra.mxu0 0
        %1951 = vmatprep.subr.bf16.mxu0 0
        %1952 = vmatpush2.bf16.msra.mxu0 0
        %1953 = vmatprep.subr.bf16.mxu0 0
        %1954 = vmatpush2.bf16.msra.mxu0 0
        %1955 = vmatprep.subr.bf16.mxu0 0
        %1956 = vmatpush2.bf16.msra.mxu0 0
        %1957 = vmatprep.subr.bf16.mxu0 0
        %1958 = vmatpush2.bf16.msra.mxu0 0
        %1959 = vmatprep.subr.bf16.mxu0 0
        %1960 = vmatpush2.bf16.msra.mxu0 0
        %1961 = vmatprep.subr.bf16.mxu0 0
        %1962 = vmatpush2.bf16.msra.mxu0 0
        %1963 = vmatprep.mubr.bf16.mxu0 0
        %1964 = vmatmul.mubr.bf16.gmra.mxu0 %v1926
        %v1965 = vpop.f32.mrf.mxu0
        %v1966 = vadd.f32 0.0, %v1965
        %v1967 = vpop.f32.mrf.mxu0
        %v1968 = vpop.f32.mrf.mxu0
        %v1969 = vpop.f32.mrf.mxu0
        %1970 = vdwg.mxu0
        %v1971 = vadd.f32 %v1593, %v1966
        %v1972 = vadd.f32 %v451, %v1971
        %v1973 = vld [vmem:[%s8] sm:$0x1]
        %v1974 = vlaneseq
        %v1975 = vshrl.u32 %v1974, 7
        %v1976 = vsub.s32 0, %v1975
        %v1977 = vrot.slane %v1973, %v1976
        %v1978 = vadd.f32 %v1972, %v1977
        %v1979 = vld [vmem:[%s8 + $0x1] sm:$0x1]
        %v1980 = vld [vmem:[%s8 + $0x2] sm:$0x1]
        %v1981 = vsel %vm479, %v1978, 0.0
        %1982 = vadd.xlane.f32.xlu0 %v1981
        %v1983 = vpop.xlane.xlu0 %1982
        %v1984 = vrcp.pop 32.0
        %v1985 = vmul.f32 %v1983, %v1984
        %v1986 = vsub.f32 %v1978, %v1985
        %v1987 = vmul.f32 %v1986, %v1986
        %v1988 = vsel %vm479, %v1987, 0.0
        %1989 = vadd.xlane.f32.xlu0 %v1988
        %v1990 = vpop.xlane.xlu0 %1989
        %v1991 = vmul.f32 %v1990, %v1984
        %v1992 = vadd.f32 %v1991, 1e-05
        %v1993 = vrsqrt.pop %v1992
        %v1994 = vmul.f32 %v1986, %v1993
        %v1995 = vlaneseq
        %v1996 = vshrl.u32 %v1995, 7
        %v1997 = vsub.s32 0, %v1996
        %v1998 = vrot.slane %v1979, %v1997
        %v1999 = vmul.f32 %v1994, %v1998
        %v2000 = vlaneseq
        %v2001 = vshrl.u32 %v2000, 7
        %v2002 = vsub.s32 0, %v2001
        %v2003 = vrot.slane %v1980, %v2002
        %v2004 = vadd.f32 %v1999, %v2003
        %v2005 = vpack.c.bf16 %v2004, %v2004
        %v2006 = vld [vmem:[%s6] sm:$0xf]
        %v2007 = vld [vmem:[%s6 + $0x4] sm:$0xf]
        %v2008 = vld [vmem:[%s6 + $0x8] sm:$0xf]
        %v2009 = vld [vmem:[%s6 + $0xc] sm:$0xf]
        %v2010 = vld [vmem:[%s9] sm:$0x1]
        %v2012 = vlaneseq
        %v2013 = vshrl.u32 %v2012, 7
        %v2014 = vsub.s32 0, %v2013
        %v2015 = vrot.slane %v2010, %v2014
        %v2021 = vunpack.c.l.b16 %v2006
        %v2022 = vunpack.c.l.b16 %v2007
        %v2023 = vunpack.c.l.b16 %v2008
        %v2024 = vunpack.c.l.b16 %v2009
        %v2025 = vpack.c.b16 %v2022, %v2021
        %v2026 = vpack.c.b16 %v2024, %v2023
        %v2030 = vsel %vm479, %v2005, 0
        %2032 = vmatprep.subr.bf16.mxu0 0
        %2033 = vmatpush1.bf16.msra.mxu0 0
        %2034 = vmatprep.subr.bf16.mxu0 0
        %2035 = vmatpush1.bf16.msra.mxu0 0
        %2036 = vmatprep.subr.bf16.mxu0 0
        %2037 = vmatpush1.bf16.msra.mxu0 0
        %2038 = vmatprep.subr.bf16.mxu0 0
        %2039 = vmatpush1.bf16.msra.mxu0 0
        %2040 = vmatprep.subr.bf16.mxu0 0
        %2041 = vmatpush1.bf16.msra.mxu0 0
        %2042 = vmatprep.subr.bf16.mxu0 0
        %2043 = vmatpush1.bf16.msra.mxu0 0
        %2044 = vmatprep.subr.bf16.mxu0 0
        %2045 = vmatpush1.bf16.msra.mxu0 %v2026
        %2046 = vmatprep.subr.bf16.mxu0 0
        %2047 = vmatpush1.bf16.msra.mxu0 %v2025
        %2048 = vmatprep.subr.bf16.mxu0 0
        %2049 = vmatpush2.bf16.msra.mxu0 0
        %2050 = vmatprep.subr.bf16.mxu0 0
        %2051 = vmatpush2.bf16.msra.mxu0 0
        %2052 = vmatprep.subr.bf16.mxu0 0
        %2053 = vmatpush2.bf16.msra.mxu0 0
        %2054 = vmatprep.subr.bf16.mxu0 0
        %2055 = vmatpush2.bf16.msra.mxu0 0
        %2056 = vmatprep.subr.bf16.mxu0 0
        %2057 = vmatpush2.bf16.msra.mxu0 0
        %2058 = vmatprep.subr.bf16.mxu0 0
        %2059 = vmatpush2.bf16.msra.mxu0 0
        %2060 = vmatprep.subr.bf16.mxu0 0
        %2061 = vmatpush2.bf16.msra.mxu0 0
        %2062 = vmatprep.subr.bf16.mxu0 0
        %2063 = vmatpush2.bf16.msra.mxu0 0
        %2064 = vmatprep.mubr.bf16.mxu0 0
        %2065 = vmatmul.mubr.bf16.gmra.mxu0 %v2030
        %v2066 = vpop.f32.mrf.mxu0
        %v2067 = vadd.f32 %v2015, %v2066
        %v2068 = vpop.f32.mrf.mxu0
        %v2069 = vpop.f32.mrf.mxu0
        %v2070 = vpop.f32.mrf.mxu0
        %2071 = vdwg.mxu0
        %v2072 = vmax.f32 %v2067, 0.0
        %v2073 = vpack.c.bf16 %v2072, %v2072
        %v2074 = vld [vmem:[%s7] sm:$0xf]
        %v2075 = vld [vmem:[%s7 + $0x4] sm:$0xf]
        %v2076 = vld [vmem:[%s7 + $0x8] sm:$0xf]
        %v2077 = vld [vmem:[%s7 + $0xc] sm:$0xf]
        %v2078 = vld [vmem:[%s7 + $0x10] sm:$0xf]
        %v2079 = vld [vmem:[%s7 + $0x14] sm:$0xf]
        %v2080 = vld [vmem:[%s7 + $0x18] sm:$0xf]
        %v2081 = vld [vmem:[%s7 + $0x1c] sm:$0xf]
        %v2082 = vld [vmem:[%s8 + $0x3] sm:$0x1]
        %v2083 = vlaneseq
        %v2084 = vshrl.u32 %v2083, 7
        %v2085 = vsub.s32 0, %v2084
        %v2086 = vrot.slane %v2082, %v2085
        %v2095 = vunpack.c.l.b16 %v2074
        %v2096 = vunpack.c.l.b16 %v2075
        %v2097 = vunpack.c.l.b16 %v2076
        %v2098 = vunpack.c.l.b16 %v2077
        %v2099 = vunpack.c.l.b16 %v2078
        %v2100 = vunpack.c.l.b16 %v2079
        %v2101 = vunpack.c.l.b16 %v2080
        %v2102 = vunpack.c.l.b16 %v2081
        %v2103 = vpack.c.b16 %v2096, %v2095
        %v2104 = vpack.c.b16 %v2098, %v2097
        %v2105 = vpack.c.b16 %v2100, %v2099
        %v2106 = vpack.c.b16 %v2102, %v2101
        %vm2111 = vcmask 523264
        %v2113 = vsel %vm2111, %v2073, 0
        %2115 = vmatprep.subr.bf16.mxu0 0
        %2116 = vmatpush1.bf16.msra.mxu0 0
        %2117 = vmatprep.subr.bf16.mxu0 0
        %2118 = vmatpush1.bf16.msra.mxu0 0
        %2119 = vmatprep.subr.bf16.mxu0 0
        %2120 = vmatpush1.bf16.msra.mxu0 0
        %2121 = vmatprep.subr.bf16.mxu0 0
        %2122 = vmatpush1.bf16.msra.mxu0 0
        %2123 = vmatprep.subr.bf16.mxu0 0
        %2124 = vmatpush1.bf16.msra.mxu0 %v2106
        %2125 = vmatprep.subr.bf16.mxu0 0
        %2126 = vmatpush1.bf16.msra.mxu0 %v2105
        %2127 = vmatprep.subr.bf16.mxu0 0
        %2128 = vmatpush1.bf16.msra.mxu0 %v2104
        %2129 = vmatprep.subr.bf16.mxu0 0
        %2130 = vmatpush1.bf16.msra.mxu0 %v2103
        %2131 = vmatprep.subr.bf16.mxu0 0
        %2132 = vmatpush2.bf16.msra.mxu0 0
        %2133 = vmatprep.subr.bf16.mxu0 0
        %2134 = vmatpush2.bf16.msra.mxu0 0
        %2135 = vmatprep.subr.bf16.mxu0 0
        %2136 = vmatpush2.bf16.msra.mxu0 0
        %2137 = vmatprep.subr.bf16.mxu0 0
        %2138 = vmatpush2.bf16.msra.mxu0 0
        %2139 = vmatprep.subr.bf16.mxu0 0
        %2140 = vmatpush2.bf16.msra.mxu0 0
        %2141 = vmatprep.subr.bf16.mxu0 0
        %2142 = vmatpush2.bf16.msra.mxu0 0
        %2143 = vmatprep.subr.bf16.mxu0 0
        %2144 = vmatpush2.bf16.msra.mxu0 0
        %2145 = vmatprep.subr.bf16.mxu0 0
        %2146 = vmatpush2.bf16.msra.mxu0 0
        %2147 = vmatprep.mubr.bf16.mxu0 0
        %2148 = vmatmul.mubr.bf16.gmra.mxu0 %v2113
        %v2149 = vpop.f32.mrf.mxu0
        %v2150 = vadd.f32 %v2086, %v2149
        %v2151 = vpop.f32.mrf.mxu0
        %v2152 = vpop.f32.mrf.mxu0
        %v2153 = vpop.f32.mrf.mxu0
        %2154 = vdwg.mxu0
        %v2155 = vadd.f32 %v2004, %v2150
        %v2156 = vld [vmem:[%s8 + $0x4] sm:$0x1]
        %v2157 = vld [vmem:[%s8 + $0x5] sm:$0x1]
        %v2158 = vsel %vm479, %v2155, 0.0
        %2159 = vadd.xlane.f32.xlu0 %v2158
        %v2160 = vpop.xlane.xlu0 %2159
        %v2161 = vmul.f32 %v2160, %v1984
        %v2162 = vsub.f32 %v2155, %v2161
        %v2163 = vmul.f32 %v2162, %v2162
        %v2164 = vsel %vm479, %v2163, 0.0
        %2165 = vadd.xlane.f32.xlu0 %v2164
        %v2166 = vpop.xlane.xlu0 %2165
        %v2167 = vmul.f32 %v2166, %v1984
        %v2168 = vadd.f32 %v2167, 1e-05
        %v2169 = vrsqrt.pop %v2168
        %v2170 = vmul.f32 %v2162, %v2169
        %v2171 = vlaneseq
        %v2172 = vshrl.u32 %v2171, 7
        %v2173 = vsub.s32 0, %v2172
        %v2174 = vrot.slane %v2156, %v2173
        %v2175 = vmul.f32 %v2170, %v2174
        %v2176 = vlaneseq
        %v2177 = vshrl.u32 %v2176, 7
        %v2178 = vsub.s32 0, %v2177
        %v2179 = vrot.slane %v2157, %v2178
        %v2180 = vadd.f32 %v2175, %v2179
        %2181 = vst.msk [vmem:[%s449] sm:$0xff] %vm479, %v2180
        %p2182 = scmp.lt.s32.totalorder %s21, 1
        %s2183 = scalar_select %p2182, %s21, 1
        %s2184 = smul.addr %s2183, 8
        %s2185 = scalar_lea.vmem %s10, %s2184
        // Predicated region
        $region102: #{encoder_forward.2} parent=96 // pred_check
          %p2186 = pneg %p264
        $region103: #{encoder_forward.2} parent=96 // pred_check_branch
          %2188 = sbr.rel (%p2186) target = $region105
        $region104: #{encoder_forward.2} parent=96 // pred_region
          _
        $region105: #{encoder_forward.2} parent=96 // pred_fallthru
          _
      $region97: #{encoder_forward.2} parent=5 // pred_fallthru
        _
      %p2189 = scmp.le.s32.totalorder 2, %s16
      // Predicated region
      $region106: #{encoder_forward.2} parent=5 // pred_check
        %p2190 = pneg %p2189
      $region107: #{encoder_forward.2} parent=5 // pred_check_branch
        %2192 = sbr.rel (%p2190) target = $region109
      $region108: #{encoder_forward.2} parent=5 // pred_region
        %s2193 = ssub.s32 %s16, 2
        // Predicated region
        $region110: #{encoder_forward.2} parent=108 // pred_check
          %p2194 = pneg %p270
        $region111: #{encoder_forward.2} parent=108 // pred_check_branch
          %2196 = sbr.rel (%p2194) target = $region113
        $region112: #{encoder_forward.2} parent=108 // pred_region
          %p2197 = scmp.lt.s32.totalorder %s22, 1
          %s2198 = scalar_select %p2197, %s22, 1
          %s2199 = smul.addr %s2198, 8
          %s2200 = scalar_lea.vmem %s10, %s2199
        $region113: #{encoder_forward.2} parent=108 // pred_fallthru
          _
      $region109: #{encoder_forward.2} parent=5 // pred_fallthru
        _
    $region6: #{encoder_forward.2} parent=1 // loop_footer
      %s20 = sadd.s32 1, %s16
    $region7: #{encoder_forward.2} parent=1 // loop_footer_branch
      %15 = sbr.rel target = $region3
    $region8: #{encoder_forward.2} parent=1 // loop_exit
      _

</llo_original>
